<compile_context>
chip_gen: v6e
topology: v6e:2x2x1
jax: 0.10.0
libtpu: 0.0.40
codegen_flags: <defaults>
</compile_context>

<pallas_src>
import jax
import jax.numpy as jnp
from jax.experimental import pallas as pl
from jax.experimental.pallas import tpu as pltpu


# --------------------------- fused network kernel ---------------------------
def _make_fused_kernel(T, B, n_layers):
    """Single-invocation kernel: all LSTM layers + FC head, fully VMEM-resident."""

    def kernel(*refs):
        x_ref = refs[0]                                # (T*B, D_in) time-major
        layer_refs = refs[1:1 + 3 * n_layers]          # per layer: Wih^T, Whh^T, b
        wfc_ref, bfc_ref, out_ref, hs_ref = refs[1 + 3 * n_layers:]

        def cell(gates, c_prev, H):
            # Full-width transcendentals: one EUP pass each over the whole
            # (B, 4H) gates vreg, then cheap static 32-lane gate extracts.
            sig = jax.nn.sigmoid(gates)
            tnh = jnp.tanh(gates)
            i_g = sig[:, 0 * H:1 * H]
            f_g = sig[:, 1 * H:2 * H]
            g_g = tnh[:, 2 * H:3 * H]
            o_g = sig[:, 3 * H:4 * H]
            c_new = f_g * c_prev + i_g * g_g
            h_new = o_g * jnp.tanh(c_new)
            return h_new, c_new

        h = None
        for l in range(n_layers):
            wih = layer_refs[3 * l][...]       # (D_in, 4H)
            whh = layer_refs[3 * l + 1][...]   # (H, 4H)  -- loaded once, reused all T
            b = layer_refs[3 * l + 2][...]     # (1, 4H)
            H = whh.shape[0]

            # Hoisted input projection (+ bias, folded once) for ALL timesteps:
            # one batched MXU matmul; only h @ W_hh stays on the serial path.
            src = x_ref if l == 0 else hs_ref
            xp = jnp.dot(src[...], wih, preferred_element_type=jnp.float32) + b

            h = jnp.zeros((B, H), jnp.float32)
            c = jnp.zeros((B, H), jnp.float32)
            last_layer = (l == n_layers - 1)

            # Statically unrolled recurrence over T; all slices are static
            # sublane slices (rows t*B : (t+1)*B of the time-major projection).
            for t in range(T):
                gates = xp[t * B:(t + 1) * B, :] + jnp.dot(
                    h, whh, preferred_element_type=jnp.float32)
                h, c = cell(gates, c, H)
                if not last_layer:
                    # Intermediate hidden sequence stays in VMEM scratch;
                    # it never round-trips HBM.
                    hs_ref[t * B:(t + 1) * B, :] = h

        # Fused FC head on the final hidden state only; single small output store.
        out_ref[...] = (
            jnp.dot(h, wfc_ref[...], preferred_element_type=jnp.float32)
            + bfc_ref[...]
        ).astype(out_ref.dtype)

    return kernel


# ------------------------------- forward pass -------------------------------
def net_forward(x_btd, params):
    """Matches Net.forward: x [B, T, size] -> logits [B, classes]."""
    B, T, D = x_btd.shape
    lstm = params["lstm"]
    n_layers = len(lstm)
    H = lstm[0][1].shape[0]
    C = params["fc_w_t"].shape[1]

    # One tiny host-side layout op (fused by XLA): time-major, flattened to
    # (T*B, D) so the kernel loads the whole sequence with a single DMA and
    # every per-step row block is a contiguous static sublane slice.
    x_tb = jnp.transpose(x_btd, (1, 0, 2)).reshape(T * B, D)

    flat_w = []
    for (w_ih_t, w_hh_t, b) in lstm:
        flat_w += [w_ih_t, w_hh_t, b]
    flat_w += [params["fc_w_t"], params["fc_b"]]

    vmem = pl.BlockSpec(memory_space=pltpu.MemorySpace.VMEM)
    return pl.pallas_call(
        _make_fused_kernel(T, B, n_layers),
        out_shape=jax.ShapeDtypeStruct((B, C), jnp.float32),
        in_specs=[vmem] * (1 + len(flat_w)),
        out_specs=vmem,
        scratch_shapes=[
            pltpu.VMEM((T * B, H), jnp.float32),  # intermediate hidden sequence
        ],
    )(x_tb, *flat_w)


# ---------------------------- pure-JAX reference ----------------------------
def net_forward_ref(x_btd, params):
    B = x_btd.shape[0]
    h_seq = x_btd
    for (w_ih_t, w_hh_t, b) in params["lstm"]:
        H = w_hh_t.shape[0]
        h = jnp.zeros((B, H), jnp.float32)
        c = jnp.zeros((B, H), jnp.float32)
        outs = []
        for t in range(h_seq.shape[1]):
            g = h_seq[:, t, :] @ w_ih_t + h @ w_hh_t + b
            i_g = jax.nn.sigmoid(g[:, 0 * H:1 * H])
            f_g = jax.nn.sigmoid(g[:, 1 * H:2 * H])
            g_g = jnp.tanh(g[:, 2 * H:3 * H])
            o_g = jax.nn.sigmoid(g[:, 3 * H:4 * H])
            c = f_g * c + i_g * g_g
            h = o_g * jnp.tanh(c)
            outs.append(h)
        h_seq = jnp.stack(outs, axis=1)
    return h_seq[:, -1, :] @ params["fc_w_t"] + params["fc_b"]


# ----------------------------- parameter init -------------------------------
def init_params(key, size, hidden, layers, classes):
    bound = 1.0 / jnp.sqrt(hidden)
    lstm_params = []
    for l in range(layers):
        d_in = size if l == 0 else hidden
        key, k1, k2, k3, k4 = jax.random.split(key, 5)
        w_ih = jax.random.uniform(k1, (4 * hidden, d_in), jnp.float32, -bound, bound)
        w_hh = jax.random.uniform(k2, (4 * hidden, hidden), jnp.float32, -bound, bound)
        b_ih = jax.random.uniform(k3, (4 * hidden,), jnp.float32, -bound, bound)
        b_hh = jax.random.uniform(k4, (4 * hidden,), jnp.float32, -bound, bound)
        lstm_params.append(
            (w_ih.T, w_hh.T, (b_ih + b_hh).reshape(1, 4 * hidden))
        )
    key, k5, k6 = jax.random.split(key, 3)
    fb = 1.0 / jnp.sqrt(hidden)
    w_fc = jax.random.uniform(k5, (classes, hidden), jnp.float32, -fb, fb)
    b_fc = jax.random.uniform(k6, (classes,), jnp.float32, -fb, fb)
    return {"lstm": lstm_params, "fc_w_t": w_fc.T, "fc_b": b_fc.reshape(1, classes)}


if __name__ == "__main__":
    # myobj.size=16, config.hidden=32, config.layers=2, myobj.classes=5 (classify)
    B, T, SIZE, HIDDEN, LAYERS, CLASSES = 2, 8, 16, 32, 2, 5

    key = jax.random.PRNGKey(0)
    k_x, k_p = jax.random.split(key)
    x = jax.random.normal(k_x, (B, T, SIZE), jnp.float32)
    params = init_params(k_p, SIZE, HIDDEN, LAYERS, CLASSES)

    out = jax.jit(net_forward)(x, params)
    out = jax.block_until_ready(out)

    ref = net_forward_ref(x, params)
    assert out.shape == (B, CLASSES)
    assert jnp.allclose(out, ref, atol=1e-4, rtol=1e-4), "mismatch vs reference"

    # TODO(synk): observe()'s loss (CrossEntropy/MSE) and SGD/RMSprop update are
    # training-only and intentionally not implemented as kernels.
    print("KERNEL_OK")
</pallas_src>

<mosaic_0001>
module attributes {stable_mosaic.version = 11 : i64} {
  func.func @kernel(%arg0: memref<16x16xf32, #tpu.memory_space<vmem>>, %arg1: memref<16x128xf32, #tpu.memory_space<vmem>>, %arg2: memref<32x128xf32, #tpu.memory_space<vmem>>, %arg3: memref<1x128xf32, #tpu.memory_space<vmem>>, %arg4: memref<32x128xf32, #tpu.memory_space<vmem>>, %arg5: memref<32x128xf32, #tpu.memory_space<vmem>>, %arg6: memref<1x128xf32, #tpu.memory_space<vmem>>, %arg7: memref<32x5xf32, #tpu.memory_space<vmem>>, %arg8: memref<1x5xf32, #tpu.memory_space<vmem>>, %arg9: memref<2x5xf32, #tpu.memory_space<vmem>>, %arg10: memref<16x32xf32, #tpu.memory_space<vmem>>) attributes {dimension_semantics = [], scalar_prefetch = 0 : i64, scratch_operands = 1 : i64, tpu.core_type = #tpu.core_type<tc>} {
    %c0 = arith.constant 0 : index
    %c0_0 = arith.constant 0 : index
    %0 = vector.load %arg1[%c0, %c0_0] : memref<16x128xf32, #tpu.memory_space<vmem>>, vector<16x128xf32>
    %c0_1 = arith.constant 0 : index
    %c0_2 = arith.constant 0 : index
    %1 = vector.load %arg2[%c0_1, %c0_2] : memref<32x128xf32, #tpu.memory_space<vmem>>, vector<32x128xf32>
    %c0_3 = arith.constant 0 : index
    %c0_4 = arith.constant 0 : index
    %2 = vector.load %arg3[%c0_3, %c0_4] : memref<1x128xf32, #tpu.memory_space<vmem>>, vector<1x128xf32>
    %c0_5 = arith.constant 0 : index
    %c0_6 = arith.constant 0 : index
    %3 = vector.load %arg0[%c0_5, %c0_6] : memref<16x16xf32, #tpu.memory_space<vmem>>, vector<16x16xf32>
    %cst = arith.constant dense<0.000000e+00> : vector<16x128xf32>
    %4 = tpu.matmul %3, %0, %cst {dimension_numbers = #tpu.dot_dimension_numbers<[1], [0], [0], [1], [0, 0, 1, 1], [], []>} : vector<16x16xf32>, vector<16x128xf32>, vector<16x128xf32> -> vector<16x128xf32>
    %5 = vector.broadcast %2 : vector<1x128xf32> to vector<16x128xf32>
    %6 = arith.addf %4, %5 : vector<16x128xf32>
    %cst_7 = arith.constant 0.000000e+00 : f32
    %7 = vector.broadcast %cst_7 : f32 to vector<2x32xf32>
    %cst_8 = arith.constant 0.000000e+00 : f32
    %8 = vector.broadcast %cst_8 : f32 to vector<2x32xf32>
    %9 = vector.extract_strided_slice %6 {offsets = [0, 0], sizes = [2, 128], strides = [1, 1]} : vector<16x128xf32> to vector<2x128xf32>
    %cst_9 = arith.constant dense<0.000000e+00> : vector<2x128xf32>
    %10 = tpu.matmul %7, %1, %cst_9 {dimension_numbers = #tpu.dot_dimension_numbers<[1], [0], [0], [1], [0, 0, 1, 1], [], []>} : vector<2x32xf32>, vector<32x128xf32>, vector<2x128xf32> -> vector<2x128xf32>
    %11 = arith.addf %9, %10 : vector<2x128xf32>
    %12 = arith.negf %11 : vector<2x128xf32>
    %13 = math.exp %12 : vector<2x128xf32>
    %cst_10 = arith.constant 1.000000e+00 : f32
    %14 = vector.broadcast %cst_10 : f32 to vector<2x128xf32>
    %15 = arith.addf %14, %13 : vector<2x128xf32>
    %16 = arith.divf %14, %15 : vector<2x128xf32>
    %17 = math.tanh %11 : vector<2x128xf32>
    %18 = vector.extract_strided_slice %16 {offsets = [0, 0], sizes = [2, 32], strides = [1, 1]} : vector<2x128xf32> to vector<2x32xf32>
    %19 = vector.extract_strided_slice %16 {offsets = [0, 32], sizes = [2, 32], strides = [1, 1]} : vector<2x128xf32> to vector<2x32xf32>
    %20 = vector.extract_strided_slice %17 {offsets = [0, 64], sizes = [2, 32], strides = [1, 1]} : vector<2x128xf32> to vector<2x32xf32>
    %21 = vector.extract_strided_slice %16 {offsets = [0, 96], sizes = [2, 32], strides = [1, 1]} : vector<2x128xf32> to vector<2x32xf32>
    %22 = arith.mulf %19, %8 : vector<2x32xf32>
    %23 = arith.mulf %18, %20 : vector<2x32xf32>
    %24 = arith.addf %22, %23 : vector<2x32xf32>
    %25 = math.tanh %24 : vector<2x32xf32>
    %26 = arith.mulf %21, %25 : vector<2x32xf32>
    %c0_11 = arith.constant 0 : index
    %c0_12 = arith.constant 0 : index
    %27 = vector.load %arg10[%c0_11, %c0_12] : memref<16x32xf32, #tpu.memory_space<vmem>>, vector<2x32xf32>
    tpu.vector_store %arg10[%c0_11, %c0_12], %26 {strides = array<i32>} : memref<16x32xf32, #tpu.memory_space<vmem>>, vector<2x32xf32>,
    %28 = vector.extract_strided_slice %6 {offsets = [2, 0], sizes = [2, 128], strides = [1, 1]} : vector<16x128xf32> to vector<2x128xf32>
    %cst_13 = arith.constant dense<0.000000e+00> : vector<2x128xf32>
    %29 = tpu.matmul %26, %1, %cst_13 {dimension_numbers = #tpu.dot_dimension_numbers<[1], [0], [0], [1], [0, 0, 1, 1], [], []>} : vector<2x32xf32>, vector<32x128xf32>, vector<2x128xf32> -> vector<2x128xf32>
    %30 = arith.addf %28, %29 : vector<2x128xf32>
    %31 = arith.negf %30 : vector<2x128xf32>
    %32 = math.exp %31 : vector<2x128xf32>
    %cst_14 = arith.constant 1.000000e+00 : f32
    %33 = vector.broadcast %cst_14 : f32 to vector<2x128xf32>
    %34 = arith.addf %33, %32 : vector<2x128xf32>
    %35 = arith.divf %33, %34 : vector<2x128xf32>
    %36 = math.tanh %30 : vector<2x128xf32>
    %37 = vector.extract_strided_slice %35 {offsets = [0, 0], sizes = [2, 32], strides = [1, 1]} : vector<2x128xf32> to vector<2x32xf32>
    %38 = vector.extract_strided_slice %35 {offsets = [0, 32], sizes = [2, 32], strides = [1, 1]} : vector<2x128xf32> to vector<2x32xf32>
    %39 = vector.extract_strided_slice %36 {offsets = [0, 64], sizes = [2, 32], strides = [1, 1]} : vector<2x128xf32> to vector<2x32xf32>
    %40 = vector.extract_strided_slice %35 {offsets = [0, 96], sizes = [2, 32], strides = [1, 1]} : vector<2x128xf32> to vector<2x32xf32>
    %41 = arith.mulf %38, %24 : vector<2x32xf32>
    %42 = arith.mulf %37, %39 : vector<2x32xf32>
    %43 = arith.addf %41, %42 : vector<2x32xf32>
    %44 = math.tanh %43 : vector<2x32xf32>
    %45 = arith.mulf %40, %44 : vector<2x32xf32>
    %c2 = arith.constant 2 : index
    %c0_15 = arith.constant 0 : index
    %46 = vector.load %arg10[%c2, %c0_15] : memref<16x32xf32, #tpu.memory_space<vmem>>, vector<2x32xf32>
    tpu.vector_store %arg10[%c2, %c0_15], %45 {strides = array<i32>} : memref<16x32xf32, #tpu.memory_space<vmem>>, vector<2x32xf32>,
    %47 = vector.extract_strided_slice %6 {offsets = [4, 0], sizes = [2, 128], strides = [1, 1]} : vector<16x128xf32> to vector<2x128xf32>
    %cst_16 = arith.constant dense<0.000000e+00> : vector<2x128xf32>
    %48 = tpu.matmul %45, %1, %cst_16 {dimension_numbers = #tpu.dot_dimension_numbers<[1], [0], [0], [1], [0, 0, 1, 1], [], []>} : vector<2x32xf32>, vector<32x128xf32>, vector<2x128xf32> -> vector<2x128xf32>
    %49 = arith.addf %47, %48 : vector<2x128xf32>
    %50 = arith.negf %49 : vector<2x128xf32>
    %51 = math.exp %50 : vector<2x128xf32>
    %cst_17 = arith.constant 1.000000e+00 : f32
    %52 = vector.broadcast %cst_17 : f32 to vector<2x128xf32>
    %53 = arith.addf %52, %51 : vector<2x128xf32>
    %54 = arith.divf %52, %53 : vector<2x128xf32>
    %55 = math.tanh %49 : vector<2x128xf32>
    %56 = vector.extract_strided_slice %54 {offsets = [0, 0], sizes = [2, 32], strides = [1, 1]} : vector<2x128xf32> to vector<2x32xf32>
    %57 = vector.extract_strided_slice %54 {offsets = [0, 32], sizes = [2, 32], strides = [1, 1]} : vector<2x128xf32> to vector<2x32xf32>
    %58 = vector.extract_strided_slice %55 {offsets = [0, 64], sizes = [2, 32], strides = [1, 1]} : vector<2x128xf32> to vector<2x32xf32>
    %59 = vector.extract_strided_slice %54 {offsets = [0, 96], sizes = [2, 32], strides = [1, 1]} : vector<2x128xf32> to vector<2x32xf32>
    %60 = arith.mulf %57, %43 : vector<2x32xf32>
    %61 = arith.mulf %56, %58 : vector<2x32xf32>
    %62 = arith.addf %60, %61 : vector<2x32xf32>
    %63 = math.tanh %62 : vector<2x32xf32>
    %64 = arith.mulf %59, %63 : vector<2x32xf32>
    %c4 = arith.constant 4 : index
    %c0_18 = arith.constant 0 : index
    %65 = vector.load %arg10[%c4, %c0_18] : memref<16x32xf32, #tpu.memory_space<vmem>>, vector<2x32xf32>
    tpu.vector_store %arg10[%c4, %c0_18], %64 {strides = array<i32>} : memref<16x32xf32, #tpu.memory_space<vmem>>, vector<2x32xf32>,
    %66 = vector.extract_strided_slice %6 {offsets = [6, 0], sizes = [2, 128], strides = [1, 1]} : vector<16x128xf32> to vector<2x128xf32>
    %cst_19 = arith.constant dense<0.000000e+00> : vector<2x128xf32>
    %67 = tpu.matmul %64, %1, %cst_19 {dimension_numbers = #tpu.dot_dimension_numbers<[1], [0], [0], [1], [0, 0, 1, 1], [], []>} : vector<2x32xf32>, vector<32x128xf32>, vector<2x128xf32> -> vector<2x128xf32>
    %68 = arith.addf %66, %67 : vector<2x128xf32>
    %69 = arith.negf %68 : vector<2x128xf32>
    %70 = math.exp %69 : vector<2x128xf32>
    %cst_20 = arith.constant 1.000000e+00 : f32
    %71 = vector.broadcast %cst_20 : f32 to vector<2x128xf32>
    %72 = arith.addf %71, %70 : vector<2x128xf32>
    %73 = arith.divf %71, %72 : vector<2x128xf32>
    %74 = math.tanh %68 : vector<2x128xf32>
    %75 = vector.extract_strided_slice %73 {offsets = [0, 0], sizes = [2, 32], strides = [1, 1]} : vector<2x128xf32> to vector<2x32xf32>
    %76 = vector.extract_strided_slice %73 {offsets = [0, 32], sizes = [2, 32], strides = [1, 1]} : vector<2x128xf32> to vector<2x32xf32>
    %77 = vector.extract_strided_slice %74 {offsets = [0, 64], sizes = [2, 32], strides = [1, 1]} : vector<2x128xf32> to vector<2x32xf32>
    %78 = vector.extract_strided_slice %73 {offsets = [0, 96], sizes = [2, 32], strides = [1, 1]} : vector<2x128xf32> to vector<2x32xf32>
    %79 = arith.mulf %76, %62 : vector<2x32xf32>
    %80 = arith.mulf %75, %77 : vector<2x32xf32>
    %81 = arith.addf %79, %80 : vector<2x32xf32>
    %82 = math.tanh %81 : vector<2x32xf32>
    %83 = arith.mulf %78, %82 : vector<2x32xf32>
    %c6 = arith.constant 6 : index
    %c0_21 = arith.constant 0 : index
    %84 = vector.load %arg10[%c6, %c0_21] : memref<16x32xf32, #tpu.memory_space<vmem>>, vector<2x32xf32>
    tpu.vector_store %arg10[%c6, %c0_21], %83 {strides = array<i32>} : memref<16x32xf32, #tpu.memory_space<vmem>>, vector<2x32xf32>,
    %85 = vector.extract_strided_slice %6 {offsets = [8, 0], sizes = [2, 128], strides = [1, 1]} : vector<16x128xf32> to vector<2x128xf32>
    %cst_22 = arith.constant dense<0.000000e+00> : vector<2x128xf32>
    %86 = tpu.matmul %83, %1, %cst_22 {dimension_numbers = #tpu.dot_dimension_numbers<[1], [0], [0], [1], [0, 0, 1, 1], [], []>} : vector<2x32xf32>, vector<32x128xf32>, vector<2x128xf32> -> vector<2x128xf32>
    %87 = arith.addf %85, %86 : vector<2x128xf32>
    %88 = arith.negf %87 : vector<2x128xf32>
    %89 = math.exp %88 : vector<2x128xf32>
    %cst_23 = arith.constant 1.000000e+00 : f32
    %90 = vector.broadcast %cst_23 : f32 to vector<2x128xf32>
    %91 = arith.addf %90, %89 : vector<2x128xf32>
    %92 = arith.divf %90, %91 : vector<2x128xf32>
    %93 = math.tanh %87 : vector<2x128xf32>
    %94 = vector.extract_strided_slice %92 {offsets = [0, 0], sizes = [2, 32], strides = [1, 1]} : vector<2x128xf32> to vector<2x32xf32>
    %95 = vector.extract_strided_slice %92 {offsets = [0, 32], sizes = [2, 32], strides = [1, 1]} : vector<2x128xf32> to vector<2x32xf32>
    %96 = vector.extract_strided_slice %93 {offsets = [0, 64], sizes = [2, 32], strides = [1, 1]} : vector<2x128xf32> to vector<2x32xf32>
    %97 = vector.extract_strided_slice %92 {offsets = [0, 96], sizes = [2, 32], strides = [1, 1]} : vector<2x128xf32> to vector<2x32xf32>
    %98 = arith.mulf %95, %81 : vector<2x32xf32>
    %99 = arith.mulf %94, %96 : vector<2x32xf32>
    %100 = arith.addf %98, %99 : vector<2x32xf32>
    %101 = math.tanh %100 : vector<2x32xf32>
    %102 = arith.mulf %97, %101 : vector<2x32xf32>
    %c8 = arith.constant 8 : index
    %c0_24 = arith.constant 0 : index
    %103 = vector.load %arg10[%c8, %c0_24] : memref<16x32xf32, #tpu.memory_space<vmem>>, vector<2x32xf32>
    tpu.vector_store %arg10[%c8, %c0_24], %102 {strides = array<i32>} : memref<16x32xf32, #tpu.memory_space<vmem>>, vector<2x32xf32>,
    %104 = vector.extract_strided_slice %6 {offsets = [10, 0], sizes = [2, 128], strides = [1, 1]} : vector<16x128xf32> to vector<2x128xf32>
    %cst_25 = arith.constant dense<0.000000e+00> : vector<2x128xf32>
    %105 = tpu.matmul %102, %1, %cst_25 {dimension_numbers = #tpu.dot_dimension_numbers<[1], [0], [0], [1], [0, 0, 1, 1], [], []>} : vector<2x32xf32>, vector<32x128xf32>, vector<2x128xf32> -> vector<2x128xf32>
    %106 = arith.addf %104, %105 : vector<2x128xf32>
    %107 = arith.negf %106 : vector<2x128xf32>
    %108 = math.exp %107 : vector<2x128xf32>
    %cst_26 = arith.constant 1.000000e+00 : f32
    %109 = vector.broadcast %cst_26 : f32 to vector<2x128xf32>
    %110 = arith.addf %109, %108 : vector<2x128xf32>
    %111 = arith.divf %109, %110 : vector<2x128xf32>
    %112 = math.tanh %106 : vector<2x128xf32>
    %113 = vector.extract_strided_slice %111 {offsets = [0, 0], sizes = [2, 32], strides = [1, 1]} : vector<2x128xf32> to vector<2x32xf32>
    %114 = vector.extract_strided_slice %111 {offsets = [0, 32], sizes = [2, 32], strides = [1, 1]} : vector<2x128xf32> to vector<2x32xf32>
    %115 = vector.extract_strided_slice %112 {offsets = [0, 64], sizes = [2, 32], strides = [1, 1]} : vector<2x128xf32> to vector<2x32xf32>
    %116 = vector.extract_strided_slice %111 {offsets = [0, 96], sizes = [2, 32], strides = [1, 1]} : vector<2x128xf32> to vector<2x32xf32>
    %117 = arith.mulf %114, %100 : vector<2x32xf32>
    %118 = arith.mulf %113, %115 : vector<2x32xf32>
    %119 = arith.addf %117, %118 : vector<2x32xf32>
    %120 = math.tanh %119 : vector<2x32xf32>
    %121 = arith.mulf %116, %120 : vector<2x32xf32>
    %c10 = arith.constant 10 : index
    %c0_27 = arith.constant 0 : index
    %122 = vector.load %arg10[%c10, %c0_27] : memref<16x32xf32, #tpu.memory_space<vmem>>, vector<2x32xf32>
    tpu.vector_store %arg10[%c10, %c0_27], %121 {strides = array<i32>} : memref<16x32xf32, #tpu.memory_space<vmem>>, vector<2x32xf32>,
    %123 = vector.extract_strided_slice %6 {offsets = [12, 0], sizes = [2, 128], strides = [1, 1]} : vector<16x128xf32> to vector<2x128xf32>
    %cst_28 = arith.constant dense<0.000000e+00> : vector<2x128xf32>
    %124 = tpu.matmul %121, %1, %cst_28 {dimension_numbers = #tpu.dot_dimension_numbers<[1], [0], [0], [1], [0, 0, 1, 1], [], []>} : vector<2x32xf32>, vector<32x128xf32>, vector<2x128xf32> -> vector<2x128xf32>
    %125 = arith.addf %123, %124 : vector<2x128xf32>
    %126 = arith.negf %125 : vector<2x128xf32>
    %127 = math.exp %126 : vector<2x128xf32>
    %cst_29 = arith.constant 1.000000e+00 : f32
    %128 = vector.broadcast %cst_29 : f32 to vector<2x128xf32>
    %129 = arith.addf %128, %127 : vector<2x128xf32>
    %130 = arith.divf %128, %129 : vector<2x128xf32>
    %131 = math.tanh %125 : vector<2x128xf32>
    %132 = vector.extract_strided_slice %130 {offsets = [0, 0], sizes = [2, 32], strides = [1, 1]} : vector<2x128xf32> to vector<2x32xf32>
    %133 = vector.extract_strided_slice %130 {offsets = [0, 32], sizes = [2, 32], strides = [1, 1]} : vector<2x128xf32> to vector<2x32xf32>
    %134 = vector.extract_strided_slice %131 {offsets = [0, 64], sizes = [2, 32], strides = [1, 1]} : vector<2x128xf32> to vector<2x32xf32>
    %135 = vector.extract_strided_slice %130 {offsets = [0, 96], sizes = [2, 32], strides = [1, 1]} : vector<2x128xf32> to vector<2x32xf32>
    %136 = arith.mulf %133, %119 : vector<2x32xf32>
    %137 = arith.mulf %132, %134 : vector<2x32xf32>
    %138 = arith.addf %136, %137 : vector<2x32xf32>
    %139 = math.tanh %138 : vector<2x32xf32>
    %140 = arith.mulf %135, %139 : vector<2x32xf32>
    %c12 = arith.constant 12 : index
    %c0_30 = arith.constant 0 : index
    %141 = vector.load %arg10[%c12, %c0_30] : memref<16x32xf32, #tpu.memory_space<vmem>>, vector<2x32xf32>
    tpu.vector_store %arg10[%c12, %c0_30], %140 {strides = array<i32>} : memref<16x32xf32, #tpu.memory_space<vmem>>, vector<2x32xf32>,
    %142 = vector.extract_strided_slice %6 {offsets = [14, 0], sizes = [2, 128], strides = [1, 1]} : vector<16x128xf32> to vector<2x128xf32>
    %cst_31 = arith.constant dense<0.000000e+00> : vector<2x128xf32>
    %143 = tpu.matmul %140, %1, %cst_31 {dimension_numbers = #tpu.dot_dimension_numbers<[1], [0], [0], [1], [0, 0, 1, 1], [], []>} : vector<2x32xf32>, vector<32x128xf32>, vector<2x128xf32> -> vector<2x128xf32>
    %144 = arith.addf %142, %143 : vector<2x128xf32>
    %145 = arith.negf %144 : vector<2x128xf32>
    %146 = math.exp %145 : vector<2x128xf32>
    %cst_32 = arith.constant 1.000000e+00 : f32
    %147 = vector.broadcast %cst_32 : f32 to vector<2x128xf32>
    %148 = arith.addf %147, %146 : vector<2x128xf32>
    %149 = arith.divf %147, %148 : vector<2x128xf32>
    %150 = math.tanh %144 : vector<2x128xf32>
    %151 = vector.extract_strided_slice %149 {offsets = [0, 0], sizes = [2, 32], strides = [1, 1]} : vector<2x128xf32> to vector<2x32xf32>
    %152 = vector.extract_strided_slice %149 {offsets = [0, 32], sizes = [2, 32], strides = [1, 1]} : vector<2x128xf32> to vector<2x32xf32>
    %153 = vector.extract_strided_slice %150 {offsets = [0, 64], sizes = [2, 32], strides = [1, 1]} : vector<2x128xf32> to vector<2x32xf32>
    %154 = vector.extract_strided_slice %149 {offsets = [0, 96], sizes = [2, 32], strides = [1, 1]} : vector<2x128xf32> to vector<2x32xf32>
    %155 = arith.mulf %152, %138 : vector<2x32xf32>
    %156 = arith.mulf %151, %153 : vector<2x32xf32>
    %157 = arith.addf %155, %156 : vector<2x32xf32>
    %158 = math.tanh %157 : vector<2x32xf32>
    %159 = arith.mulf %154, %158 : vector<2x32xf32>
    %c14 = arith.constant 14 : index
    %c0_33 = arith.constant 0 : index
    %160 = vector.load %arg10[%c14, %c0_33] : memref<16x32xf32, #tpu.memory_space<vmem>>, vector<2x32xf32>
    tpu.vector_store %arg10[%c14, %c0_33], %159 {strides = array<i32>} : memref<16x32xf32, #tpu.memory_space<vmem>>, vector<2x32xf32>,
    %c0_34 = arith.constant 0 : index
    %c0_35 = arith.constant 0 : index
    %161 = vector.load %arg4[%c0_34, %c0_35] : memref<32x128xf32, #tpu.memory_space<vmem>>, vector<32x128xf32>
    %c0_36 = arith.constant 0 : index
    %c0_37 = arith.constant 0 : index
    %162 = vector.load %arg5[%c0_36, %c0_37] : memref<32x128xf32, #tpu.memory_space<vmem>>, vector<32x128xf32>
    %c0_38 = arith.constant 0 : index
    %c0_39 = arith.constant 0 : index
    %163 = vector.load %arg6[%c0_38, %c0_39] : memref<1x128xf32, #tpu.memory_space<vmem>>, vector<1x128xf32>
    %c0_40 = arith.constant 0 : index
    %c0_41 = arith.constant 0 : index
    %164 = vector.load %arg10[%c0_40, %c0_41] : memref<16x32xf32, #tpu.memory_space<vmem>>, vector<16x32xf32>
    %cst_42 = arith.constant dense<0.000000e+00> : vector<16x128xf32>
    %165 = tpu.matmul %164, %161, %cst_42 {dimension_numbers = #tpu.dot_dimension_numbers<[1], [0], [0], [1], [0, 0, 1, 1], [], []>} : vector<16x32xf32>, vector<32x128xf32>, vector<16x128xf32> -> vector<16x128xf32>
    %166 = vector.broadcast %163 : vector<1x128xf32> to vector<16x128xf32>
    %167 = arith.addf %165, %166 : vector<16x128xf32>
    %cst_43 = arith.constant 0.000000e+00 : f32
    %168 = vector.broadcast %cst_43 : f32 to vector<2x32xf32>
    %cst_44 = arith.constant 0.000000e+00 : f32
    %169 = vector.broadcast %cst_44 : f32 to vector<2x32xf32>
    %170 = vector.extract_strided_slice %167 {offsets = [0, 0], sizes = [2, 128], strides = [1, 1]} : vector<16x128xf32> to vector<2x128xf32>
    %cst_45 = arith.constant dense<0.000000e+00> : vector<2x128xf32>
    %171 = tpu.matmul %168, %162, %cst_45 {dimension_numbers = #tpu.dot_dimension_numbers<[1], [0], [0], [1], [0, 0, 1, 1], [], []>} : vector<2x32xf32>, vector<32x128xf32>, vector<2x128xf32> -> vector<2x128xf32>
    %172 = arith.addf %170, %171 : vector<2x128xf32>
    %173 = arith.negf %172 : vector<2x128xf32>
    %174 = math.exp %173 : vector<2x128xf32>
    %cst_46 = arith.constant 1.000000e+00 : f32
    %175 = vector.broadcast %cst_46 : f32 to vector<2x128xf32>
    %176 = arith.addf %175, %174 : vector<2x128xf32>
    %177 = arith.divf %175, %176 : vector<2x128xf32>
    %178 = math.tanh %172 : vector<2x128xf32>
    %179 = vector.extract_strided_slice %177 {offsets = [0, 0], sizes = [2, 32], strides = [1, 1]} : vector<2x128xf32> to vector<2x32xf32>
    %180 = vector.extract_strided_slice %177 {offsets = [0, 32], sizes = [2, 32], strides = [1, 1]} : vector<2x128xf32> to vector<2x32xf32>
    %181 = vector.extract_strided_slice %178 {offsets = [0, 64], sizes = [2, 32], strides = [1, 1]} : vector<2x128xf32> to vector<2x32xf32>
    %182 = vector.extract_strided_slice %177 {offsets = [0, 96], sizes = [2, 32], strides = [1, 1]} : vector<2x128xf32> to vector<2x32xf32>
    %183 = arith.mulf %180, %169 : vector<2x32xf32>
    %184 = arith.mulf %179, %181 : vector<2x32xf32>
    %185 = arith.addf %183, %184 : vector<2x32xf32>
    %186 = math.tanh %185 : vector<2x32xf32>
    %187 = arith.mulf %182, %186 : vector<2x32xf32>
    %188 = vector.extract_strided_slice %167 {offsets = [2, 0], sizes = [2, 128], strides = [1, 1]} : vector<16x128xf32> to vector<2x128xf32>
    %cst_47 = arith.constant dense<0.000000e+00> : vector<2x128xf32>
    %189 = tpu.matmul %187, %162, %cst_47 {dimension_numbers = #tpu.dot_dimension_numbers<[1], [0], [0], [1], [0, 0, 1, 1], [], []>} : vector<2x32xf32>, vector<32x128xf32>, vector<2x128xf32> -> vector<2x128xf32>
    %190 = arith.addf %188, %189 : vector<2x128xf32>
    %191 = arith.negf %190 : vector<2x128xf32>
    %192 = math.exp %191 : vector<2x128xf32>
    %cst_48 = arith.constant 1.000000e+00 : f32
    %193 = vector.broadcast %cst_48 : f32 to vector<2x128xf32>
    %194 = arith.addf %193, %192 : vector<2x128xf32>
    %195 = arith.divf %193, %194 : vector<2x128xf32>
    %196 = math.tanh %190 : vector<2x128xf32>
    %197 = vector.extract_strided_slice %195 {offsets = [0, 0], sizes = [2, 32], strides = [1, 1]} : vector<2x128xf32> to vector<2x32xf32>
    %198 = vector.extract_strided_slice %195 {offsets = [0, 32], sizes = [2, 32], strides = [1, 1]} : vector<2x128xf32> to vector<2x32xf32>
    %199 = vector.extract_strided_slice %196 {offsets = [0, 64], sizes = [2, 32], strides = [1, 1]} : vector<2x128xf32> to vector<2x32xf32>
    %200 = vector.extract_strided_slice %195 {offsets = [0, 96], sizes = [2, 32], strides = [1, 1]} : vector<2x128xf32> to vector<2x32xf32>
    %201 = arith.mulf %198, %185 : vector<2x32xf32>
    %202 = arith.mulf %197, %199 : vector<2x32xf32>
    %203 = arith.addf %201, %202 : vector<2x32xf32>
    %204 = math.tanh %203 : vector<2x32xf32>
    %205 = arith.mulf %200, %204 : vector<2x32xf32>
    %206 = vector.extract_strided_slice %167 {offsets = [4, 0], sizes = [2, 128], strides = [1, 1]} : vector<16x128xf32> to vector<2x128xf32>
    %cst_49 = arith.constant dense<0.000000e+00> : vector<2x128xf32>
    %207 = tpu.matmul %205, %162, %cst_49 {dimension_numbers = #tpu.dot_dimension_numbers<[1], [0], [0], [1], [0, 0, 1, 1], [], []>} : vector<2x32xf32>, vector<32x128xf32>, vector<2x128xf32> -> vector<2x128xf32>
    %208 = arith.addf %206, %207 : vector<2x128xf32>
    %209 = arith.negf %208 : vector<2x128xf32>
    %210 = math.exp %209 : vector<2x128xf32>
    %cst_50 = arith.constant 1.000000e+00 : f32
    %211 = vector.broadcast %cst_50 : f32 to vector<2x128xf32>
    %212 = arith.addf %211, %210 : vector<2x128xf32>
    %213 = arith.divf %211, %212 : vector<2x128xf32>
    %214 = math.tanh %208 : vector<2x128xf32>
    %215 = vector.extract_strided_slice %213 {offsets = [0, 0], sizes = [2, 32], strides = [1, 1]} : vector<2x128xf32> to vector<2x32xf32>
    %216 = vector.extract_strided_slice %213 {offsets = [0, 32], sizes = [2, 32], strides = [1, 1]} : vector<2x128xf32> to vector<2x32xf32>
    %217 = vector.extract_strided_slice %214 {offsets = [0, 64], sizes = [2, 32], strides = [1, 1]} : vector<2x128xf32> to vector<2x32xf32>
    %218 = vector.extract_strided_slice %213 {offsets = [0, 96], sizes = [2, 32], strides = [1, 1]} : vector<2x128xf32> to vector<2x32xf32>
    %219 = arith.mulf %216, %203 : vector<2x32xf32>
    %220 = arith.mulf %215, %217 : vector<2x32xf32>
    %221 = arith.addf %219, %220 : vector<2x32xf32>
    %222 = math.tanh %221 : vector<2x32xf32>
    %223 = arith.mulf %218, %222 : vector<2x32xf32>
    %224 = vector.extract_strided_slice %167 {offsets = [6, 0], sizes = [2, 128], strides = [1, 1]} : vector<16x128xf32> to vector<2x128xf32>
    %cst_51 = arith.constant dense<0.000000e+00> : vector<2x128xf32>
    %225 = tpu.matmul %223, %162, %cst_51 {dimension_numbers = #tpu.dot_dimension_numbers<[1], [0], [0], [1], [0, 0, 1, 1], [], []>} : vector<2x32xf32>, vector<32x128xf32>, vector<2x128xf32> -> vector<2x128xf32>
    %226 = arith.addf %224, %225 : vector<2x128xf32>
    %227 = arith.negf %226 : vector<2x128xf32>
    %228 = math.exp %227 : vector<2x128xf32>
    %cst_52 = arith.constant 1.000000e+00 : f32
    %229 = vector.broadcast %cst_52 : f32 to vector<2x128xf32>
    %230 = arith.addf %229, %228 : vector<2x128xf32>
    %231 = arith.divf %229, %230 : vector<2x128xf32>
    %232 = math.tanh %226 : vector<2x128xf32>
    %233 = vector.extract_strided_slice %231 {offsets = [0, 0], sizes = [2, 32], strides = [1, 1]} : vector<2x128xf32> to vector<2x32xf32>
    %234 = vector.extract_strided_slice %231 {offsets = [0, 32], sizes = [2, 32], strides = [1, 1]} : vector<2x128xf32> to vector<2x32xf32>
    %235 = vector.extract_strided_slice %232 {offsets = [0, 64], sizes = [2, 32], strides = [1, 1]} : vector<2x128xf32> to vector<2x32xf32>
    %236 = vector.extract_strided_slice %231 {offsets = [0, 96], sizes = [2, 32], strides = [1, 1]} : vector<2x128xf32> to vector<2x32xf32>
    %237 = arith.mulf %234, %221 : vector<2x32xf32>
    %238 = arith.mulf %233, %235 : vector<2x32xf32>
    %239 = arith.addf %237, %238 : vector<2x32xf32>
    %240 = math.tanh %239 : vector<2x32xf32>
    %241 = arith.mulf %236, %240 : vector<2x32xf32>
    %242 = vector.extract_strided_slice %167 {offsets = [8, 0], sizes = [2, 128], strides = [1, 1]} : vector<16x128xf32> to vector<2x128xf32>
    %cst_53 = arith.constant dense<0.000000e+00> : vector<2x128xf32>
    %243 = tpu.matmul %241, %162, %cst_53 {dimension_numbers = #tpu.dot_dimension_numbers<[1], [0], [0], [1], [0, 0, 1, 1], [], []>} : vector<2x32xf32>, vector<32x128xf32>, vector<2x128xf32> -> vector<2x128xf32>
    %244 = arith.addf %242, %243 : vector<2x128xf32>
    %245 = arith.negf %244 : vector<2x128xf32>
    %246 = math.exp %245 : vector<2x128xf32>
    %cst_54 = arith.constant 1.000000e+00 : f32
    %247 = vector.broadcast %cst_54 : f32 to vector<2x128xf32>
    %248 = arith.addf %247, %246 : vector<2x128xf32>
    %249 = arith.divf %247, %248 : vector<2x128xf32>
    %250 = math.tanh %244 : vector<2x128xf32>
    %251 = vector.extract_strided_slice %249 {offsets = [0, 0], sizes = [2, 32], strides = [1, 1]} : vector<2x128xf32> to vector<2x32xf32>
    %252 = vector.extract_strided_slice %249 {offsets = [0, 32], sizes = [2, 32], strides = [1, 1]} : vector<2x128xf32> to vector<2x32xf32>
    %253 = vector.extract_strided_slice %250 {offsets = [0, 64], sizes = [2, 32], strides = [1, 1]} : vector<2x128xf32> to vector<2x32xf32>
    %254 = vector.extract_strided_slice %249 {offsets = [0, 96], sizes = [2, 32], strides = [1, 1]} : vector<2x128xf32> to vector<2x32xf32>
    %255 = arith.mulf %252, %239 : vector<2x32xf32>
    %256 = arith.mulf %251, %253 : vector<2x32xf32>
    %257 = arith.addf %255, %256 : vector<2x32xf32>
    %258 = math.tanh %257 : vector<2x32xf32>
    %259 = arith.mulf %254, %258 : vector<2x32xf32>
    %260 = vector.extract_strided_slice %167 {offsets = [10, 0], sizes = [2, 128], strides = [1, 1]} : vector<16x128xf32> to vector<2x128xf32>
    %cst_55 = arith.constant dense<0.000000e+00> : vector<2x128xf32>
    %261 = tpu.matmul %259, %162, %cst_55 {dimension_numbers = #tpu.dot_dimension_numbers<[1], [0], [0], [1], [0, 0, 1, 1], [], []>} : vector<2x32xf32>, vector<32x128xf32>, vector<2x128xf32> -> vector<2x128xf32>
    %262 = arith.addf %260, %261 : vector<2x128xf32>
    %263 = arith.negf %262 : vector<2x128xf32>
    %264 = math.exp %263 : vector<2x128xf32>
    %cst_56 = arith.constant 1.000000e+00 : f32
    %265 = vector.broadcast %cst_56 : f32 to vector<2x128xf32>
    %266 = arith.addf %265, %264 : vector<2x128xf32>
    %267 = arith.divf %265, %266 : vector<2x128xf32>
    %268 = math.tanh %262 : vector<2x128xf32>
    %269 = vector.extract_strided_slice %267 {offsets = [0, 0], sizes = [2, 32], strides = [1, 1]} : vector<2x128xf32> to vector<2x32xf32>
    %270 = vector.extract_strided_slice %267 {offsets = [0, 32], sizes = [2, 32], strides = [1, 1]} : vector<2x128xf32> to vector<2x32xf32>
    %271 = vector.extract_strided_slice %268 {offsets = [0, 64], sizes = [2, 32], strides = [1, 1]} : vector<2x128xf32> to vector<2x32xf32>
    %272 = vector.extract_strided_slice %267 {offsets = [0, 96], sizes = [2, 32], strides = [1, 1]} : vector<2x128xf32> to vector<2x32xf32>
    %273 = arith.mulf %270, %257 : vector<2x32xf32>
    %274 = arith.mulf %269, %271 : vector<2x32xf32>
    %275 = arith.addf %273, %274 : vector<2x32xf32>
    %276 = math.tanh %275 : vector<2x32xf32>
    %277 = arith.mulf %272, %276 : vector<2x32xf32>
    %278 = vector.extract_strided_slice %167 {offsets = [12, 0], sizes = [2, 128], strides = [1, 1]} : vector<16x128xf32> to vector<2x128xf32>
    %cst_57 = arith.constant dense<0.000000e+00> : vector<2x128xf32>
    %279 = tpu.matmul %277, %162, %cst_57 {dimension_numbers = #tpu.dot_dimension_numbers<[1], [0], [0], [1], [0, 0, 1, 1], [], []>} : vector<2x32xf32>, vector<32x128xf32>, vector<2x128xf32> -> vector<2x128xf32>
    %280 = arith.addf %278, %279 : vector<2x128xf32>
    %281 = arith.negf %280 : vector<2x128xf32>
    %282 = math.exp %281 : vector<2x128xf32>
    %cst_58 = arith.constant 1.000000e+00 : f32
    %283 = vector.broadcast %cst_58 : f32 to vector<2x128xf32>
    %284 = arith.addf %283, %282 : vector<2x128xf32>
    %285 = arith.divf %283, %284 : vector<2x128xf32>
    %286 = math.tanh %280 : vector<2x128xf32>
    %287 = vector.extract_strided_slice %285 {offsets = [0, 0], sizes = [2, 32], strides = [1, 1]} : vector<2x128xf32> to vector<2x32xf32>
    %288 = vector.extract_strided_slice %285 {offsets = [0, 32], sizes = [2, 32], strides = [1, 1]} : vector<2x128xf32> to vector<2x32xf32>
    %289 = vector.extract_strided_slice %286 {offsets = [0, 64], sizes = [2, 32], strides = [1, 1]} : vector<2x128xf32> to vector<2x32xf32>
    %290 = vector.extract_strided_slice %285 {offsets = [0, 96], sizes = [2, 32], strides = [1, 1]} : vector<2x128xf32> to vector<2x32xf32>
    %291 = arith.mulf %288, %275 : vector<2x32xf32>
    %292 = arith.mulf %287, %289 : vector<2x32xf32>
    %293 = arith.addf %291, %292 : vector<2x32xf32>
    %294 = math.tanh %293 : vector<2x32xf32>
    %295 = arith.mulf %290, %294 : vector<2x32xf32>
    %296 = vector.extract_strided_slice %167 {offsets = [14, 0], sizes = [2, 128], strides = [1, 1]} : vector<16x128xf32> to vector<2x128xf32>
    %cst_59 = arith.constant dense<0.000000e+00> : vector<2x128xf32>
    %297 = tpu.matmul %295, %162, %cst_59 {dimension_numbers = #tpu.dot_dimension_numbers<[1], [0], [0], [1], [0, 0, 1, 1], [], []>} : vector<2x32xf32>, vector<32x128xf32>, vector<2x128xf32> -> vector<2x128xf32>
    %298 = arith.addf %296, %297 : vector<2x128xf32>
    %299 = arith.negf %298 : vector<2x128xf32>
    %300 = math.exp %299 : vector<2x128xf32>
    %cst_60 = arith.constant 1.000000e+00 : f32
    %301 = vector.broadcast %cst_60 : f32 to vector<2x128xf32>
    %302 = arith.addf %301, %300 : vector<2x128xf32>
    %303 = arith.divf %301, %302 : vector<2x128xf32>
    %304 = math.tanh %298 : vector<2x128xf32>
    %305 = vector.extract_strided_slice %303 {offsets = [0, 0], sizes = [2, 32], strides = [1, 1]} : vector<2x128xf32> to vector<2x32xf32>
    %306 = vector.extract_strided_slice %303 {offsets = [0, 32], sizes = [2, 32], strides = [1, 1]} : vector<2x128xf32> to vector<2x32xf32>
    %307 = vector.extract_strided_slice %304 {offsets = [0, 64], sizes = [2, 32], strides = [1, 1]} : vector<2x128xf32> to vector<2x32xf32>
    %308 = vector.extract_strided_slice %303 {offsets = [0, 96], sizes = [2, 32], strides = [1, 1]} : vector<2x128xf32> to vector<2x32xf32>
    %309 = arith.mulf %306, %293 : vector<2x32xf32>
    %310 = arith.mulf %305, %307 : vector<2x32xf32>
    %311 = arith.addf %309, %310 : vector<2x32xf32>
    %312 = math.tanh %311 : vector<2x32xf32>
    %313 = arith.mulf %308, %312 : vector<2x32xf32>
    %c0_61 = arith.constant 0 : index
    %c0_62 = arith.constant 0 : index
    %314 = vector.load %arg7[%c0_61, %c0_62] : memref<32x5xf32, #tpu.memory_space<vmem>>, vector<32x5xf32>
    %cst_63 = arith.constant dense<0.000000e+00> : vector<2x5xf32>
    %315 = tpu.matmul %313, %314, %cst_63 {dimension_numbers = #tpu.dot_dimension_numbers<[1], [0], [0], [1], [0, 0, 1, 1], [], []>} : vector<2x32xf32>, vector<32x5xf32>, vector<2x5xf32> -> vector<2x5xf32>
    %c0_64 = arith.constant 0 : index
    %c0_65 = arith.constant 0 : index
    %316 = vector.load %arg8[%c0_64, %c0_65] : memref<1x5xf32, #tpu.memory_space<vmem>>, vector<1x5xf32>
    %317 = vector.broadcast %316 : vector<1x5xf32> to vector<2x5xf32>
    %318 = arith.addf %315, %317 : vector<2x5xf32>
    %c0_66 = arith.constant 0 : index
    %c0_67 = arith.constant 0 : index
    %319 = vector.load %arg9[%c0_66, %c0_67] : memref<2x5xf32, #tpu.memory_space<vmem>>, vector<2x5xf32>
    tpu.vector_store %arg9[%c0_66, %c0_67], %318 {strides = array<i32>} : memref<2x5xf32, #tpu.memory_space<vmem>>, vector<2x5xf32>,
    return
  }
}

</mosaic_0001>

<llo_original>
// kernel: net_forward.1
$region0: #{net_forward.1}
  #allocation0 [shape = 'u32[]', space=smem, size = 0x4, offset = 0x4, fixed_abs, tag = 'smem constant byte address 0x4 - core index']
  #allocation1 [shape = 'u32[144,128]{1,0:T(1,128)}', space=vmem, size = 0x12000, scoped, tag = 'internal scratch']
  #allocation2 [shape = 'f32[16,32]{1,0:T(8,128)}', space=vmem, size = 0x2000, scoped, tag = 'scratch operand']
  %s0 = inlined_call_operand.vmem [shape: f32[16,16], index: 0, kind: input, shape index: {}]
  %s1 = inlined_call_operand.vmem [shape: f32[16,128], index: 1, kind: input, shape index: {}]
  %s2 = inlined_call_operand.vmem [shape: f32[32,128], index: 2, kind: input, shape index: {}]
  %s3 = inlined_call_operand.vmem [shape: f32[1,128], index: 3, kind: input, shape index: {}]
  %s4 = inlined_call_operand.vmem [shape: f32[32,128], index: 4, kind: input, shape index: {}]
  %s5 = inlined_call_operand.hbm [shape: f32[32,128], index: 5, kind: input, shape index: {}]
  %s6 = inlined_call_operand.vmem [shape: f32[1,128], index: 6, kind: input, shape index: {}]
  %s7 = inlined_call_operand.vmem [shape: f32[32,5], index: 7, kind: input, shape index: {}]
  %s8 = inlined_call_operand.hbm [shape: f32[1,5], index: 8, kind: input, shape index: {}]
  %s9 = inlined_call_operand.hbm [shape: f32[2,5], index: 9, kind: output, shape index: {}]
  %s10 = sld [smem:[#allocation0]]
  $region54: #{net_forward.1} parent=0
    _
  %s12 = ssub.s32 1, %s10
  %s13 = scalar_select 0, %s12, %s10
  $region1: #{net_forward.1} parent=0
    #allocation3 [shape = 'u8[16384]{0}', space=vmem, size = 0x4000, scoped, tag = 'input window, operand 5, single buffered']
    #allocation4 [shape = 's32[1]{0}', space=sflag, size = 0x4, scoped, tag = 'scoped memory for net_forward.1']
    #allocation5 [shape = 's32[1]{0}', space=sflag, size = 0x4, scoped, tag = 'scoped memory for net_forward.1']
    #allocation6 [shape = 'u8[512]{0}', space=vmem, size = 0x400, scoped, tag = 'input window, operand 8, single buffered']
    #allocation7 [shape = 's32[1]{0}', space=sflag, size = 0x4, scoped, tag = 'scoped memory for net_forward.1']
    #allocation8 [shape = 'u8[1024]{0}', space=vmem, size = 0x400, scoped, tag = 'output window, operand 0, single buffered']
    %14 = vsyncpa [#allocation4], 0
    %15 = vsyncpa [#allocation7], 0
    %16 = vsyncpa [#allocation5], 0
    // Predicated region
    $region2: #{net_forward.1} parent=1 // pred_check
      _
    $region3: #{net_forward.1} parent=1 // pred_check_branch
      %18 = sbr.rel (0) target = $region5
    $region4: #{net_forward.1} parent=1 // pred_region
      _
    $region5: #{net_forward.1} parent=1 // pred_fallthru
      _
    // Predicated region
    $region6: #{net_forward.1} parent=1 // pred_check
      _
    $region7: #{net_forward.1} parent=1 // pred_check_branch
      %20 = sbr.rel (0) target = $region9
    $region8: #{net_forward.1} parent=1 // pred_region
      _
    $region9: #{net_forward.1} parent=1 // pred_fallthru
      _
    // Predicated region
    $region10: #{net_forward.1} parent=1 // pred_check
      _
    $region11: #{net_forward.1} parent=1 // pred_check_branch
      %22 = sbr.rel (0) target = $region13
    $region12: #{net_forward.1} parent=1 // pred_region
      _
    $region13: #{net_forward.1} parent=1 // pred_fallthru
      _
    // Predicated region
    $region14: #{net_forward.1} parent=1 // pred_check
      _
    $region15: #{net_forward.1} parent=1 // pred_check_branch
      %24 = sbr.rel (0) target = $region17
    $region16: #{net_forward.1} parent=1 // pred_region
      _
    $region17: #{net_forward.1} parent=1 // pred_fallthru
      _
    // Predicated region
    $region18: #{net_forward.1} parent=1 // pred_check
      _
    $region19: #{net_forward.1} parent=1 // pred_check_branch
      %26 = sbr.rel (0) target = $region21
    $region20: #{net_forward.1} parent=1 // pred_region
      _
    $region21: #{net_forward.1} parent=1 // pred_fallthru
      _
    // Predicated region
    $region22: #{net_forward.1} parent=1 // pred_check
      _
    $region23: #{net_forward.1} parent=1 // pred_check_branch
      %28 = sbr.rel (0) target = $region25
    $region24: #{net_forward.1} parent=1 // pred_region
      %s30 = ssub.s32 512, 512
      %31 = vsyncadd [#allocation4], %s30
      %s32 = sshll.u32 [#allocation3], 4
      %s33 = int_to_ptr.vmem [resolvable:$true] %s32
      %38 = dma.hbm_to_vmem [thread:$0]  %s5, 512, %s33, [#allocation4], 128, 128, 8
    $region25: #{net_forward.1} parent=1 // pred_fallthru
      _
    // Predicated region
    $region26: #{net_forward.1} parent=1 // pred_check
      _
    $region27: #{net_forward.1} parent=1 // pred_check_branch
      %40 = sbr.rel (0) target = $region29
    $region28: #{net_forward.1} parent=1 // pred_region
      _
    $region29: #{net_forward.1} parent=1 // pred_fallthru
      _
    // Predicated region
    $region30: #{net_forward.1} parent=1 // pred_check
      _
    $region31: #{net_forward.1} parent=1 // pred_check_branch
      %42 = sbr.rel (0) target = $region33
    $region32: #{net_forward.1} parent=1 // pred_region
      _
    $region33: #{net_forward.1} parent=1 // pred_fallthru
      _
    // Predicated region
    $region34: #{net_forward.1} parent=1 // pred_check
      _
    $region35: #{net_forward.1} parent=1 // pred_check_branch
      %44 = sbr.rel (0) target = $region37
    $region36: #{net_forward.1} parent=1 // pred_region
      %s46 = ssub.s32 16, 16
      %47 = vsyncadd [#allocation7], %s46
      %s49 = sshll.u32 [#allocation6], 4
      %s50 = int_to_ptr.vmem [resolvable:$true] %s49
      %52 = dma.hbm_to_vmem [thread:$0]  %s8, 16, %s50, [#allocation7]
    $region37: #{net_forward.1} parent=1 // pred_fallthru
      _
    // Predicated region
    $region38: #{net_forward.1} parent=1 // pred_check
      _
    $region39: #{net_forward.1} parent=1 // pred_check_branch
      %54 = sbr.rel (0) target = $region41
    $region40: #{net_forward.1} parent=1 // pred_region
      %55 = dma.done [#allocation4], 512
    $region41: #{net_forward.1} parent=1 // pred_fallthru
      _
    // Predicated region
    $region42: #{net_forward.1} parent=1 // pred_check
      _
    $region43: #{net_forward.1} parent=1 // pred_check_branch
      %57 = sbr.rel (0) target = $region45
    $region44: #{net_forward.1} parent=1 // pred_region
      %58 = dma.done [#allocation7], 16
    $region45: #{net_forward.1} parent=1 // pred_fallthru
      _
    %v59 = vld [vmem:[%s1] sm:$0xff]
    %v60 = vld [vmem:[%s1 + $0x8] sm:$0xff]
    %v61 = vld [vmem:[%s2] sm:$0xff]
    %v62 = vld [vmem:[%s2 + $0x8] sm:$0xff]
    %v63 = vld [vmem:[%s2 + $0x10] sm:$0xff]
    %v64 = vld [vmem:[%s2 + $0x18] sm:$0xff]
    %v65 = vld [vmem:[%s3] sm:$0x1]
    %v66 = vld [vmem:[%s0] sm:$0xff]
    %v67 = vld [vmem:[%s0 + $0x8] sm:$0xff]
    %v69 = vlaneseq
    %v70 = vshrl.u32 %v69, 7
    %v71 = vsub.s32 0, %v70
    %v72 = vrot.slane %v65, %v71
    %vm74 = vcmask 130048
    %v76 = vsel %vm74, %v66, 0
    %v79 = vsel %vm74, %v67, 0
    %81 = vmatprep.subr.mxu0 0.0
    %82 = vmatpush1.msra.mxu0 0.0
    %83 = vmatprep.subr.mxu0 0.0
    %84 = vmatpush1.msra.mxu0 0.0
    %85 = vmatprep.subr.mxu0 0.0
    %86 = vmatpush1.msra.mxu0 0.0
    %87 = vmatprep.subr.mxu0 0.0
    %88 = vmatpush1.msra.mxu0 0.0
    %89 = vmatprep.subr.mxu0 0.0
    %90 = vmatpush1.msra.mxu0 0.0
    %91 = vmatprep.subr.mxu0 0.0
    %92 = vmatpush1.msra.mxu0 0.0
    %93 = vmatprep.subr.mxu0 0.0
    %94 = vmatpush1.msra.mxu0 0.0
    %95 = vmatprep.subr.mxu0 0.0
    %96 = vmatpush1.msra.mxu0 0.0
    %97 = vmatprep.subr.mxu0 0.0
    %98 = vmatpush1.msra.mxu0 0.0
    %99 = vmatprep.subr.mxu0 0.0
    %100 = vmatpush1.msra.mxu0 0.0
    %101 = vmatprep.subr.mxu0 0.0
    %102 = vmatpush1.msra.mxu0 0.0
    %103 = vmatprep.subr.mxu0 0.0
    %104 = vmatpush1.msra.mxu0 0.0
    %105 = vmatprep.subr.mxu0 0.0
    %106 = vmatpush1.msra.mxu0 0.0
    %107 = vmatprep.subr.mxu0 0.0
    %108 = vmatpush1.msra.mxu0 0.0
    %109 = vmatprep.subr.mxu0 0.0
    %110 = vmatpush1.msra.mxu0 %v60
    %111 = vmatprep.subr.mxu0 0.0
    %112 = vmatpush1.msra.mxu0 %v59
    %113 = vmatprep.subr.mxu0 0.0
    %114 = vmatpush2.msra.mxu0 0.0
    %115 = vmatprep.subr.mxu0 0.0
    %116 = vmatpush2.msra.mxu0 0.0
    %117 = vmatprep.subr.mxu0 0.0
    %118 = vmatpush2.msra.mxu0 0.0
    %119 = vmatprep.subr.mxu0 0.0
    %120 = vmatpush2.msra.mxu0 0.0
    %121 = vmatprep.subr.mxu0 0.0
    %122 = vmatpush2.msra.mxu0 0.0
    %123 = vmatprep.subr.mxu0 0.0
    %124 = vmatpush2.msra.mxu0 0.0
    %125 = vmatprep.subr.mxu0 0.0
    %126 = vmatpush2.msra.mxu0 0.0
    %127 = vmatprep.subr.mxu0 0.0
    %128 = vmatpush2.msra.mxu0 0.0
    %129 = vmatprep.subr.mxu0 0.0
    %130 = vmatpush2.msra.mxu0 0.0
    %131 = vmatprep.subr.mxu0 0.0
    %132 = vmatpush2.msra.mxu0 0.0
    %133 = vmatprep.subr.mxu0 0.0
    %134 = vmatpush2.msra.mxu0 0.0
    %135 = vmatprep.subr.mxu0 0.0
    %136 = vmatpush2.msra.mxu0 0.0
    %137 = vmatprep.subr.mxu0 0.0
    %138 = vmatpush2.msra.mxu0 0.0
    %139 = vmatprep.subr.mxu0 0.0
    %140 = vmatpush2.msra.mxu0 0.0
    %141 = vmatprep.subr.mxu0 0.0
    %142 = vmatpush2.msra.mxu0 0.0
    %143 = vmatprep.subr.mxu0 0.0
    %144 = vmatpush2.msra.mxu0 0.0
    %145 = vmatprep.mubr.f32.mxu0 0.0
    %146 = vmatmul.mubr.f32.gmra.mxu0 %v76
    %v147 = vpop.f32.mrf.mxu0
    %v148 = vadd.f32 %v72, %v147
    %v149 = vpop.f32.mrf.mxu0
    %150 = vmatprep.mubr.f32.mxu0 0.0
    %151 = vmatmul.mubr.f32.gmra.mxu0 %v79
    %v152 = vpop.f32.mrf.mxu0
    %v153 = vadd.f32 %v72, %v152
    %v154 = vpop.f32.mrf.mxu0
    %155 = vdwg.mxu0
    %vm156 = vcmask 261120
    %v158 = vsel %vm156, 0.0, 0
    %160 = vmatprep.subr.mxu0 0.0
    %161 = vmatpush1.msra.mxu0 0.0
    %162 = vmatprep.subr.mxu0 0.0
    %163 = vmatpush1.msra.mxu0 0.0
    %164 = vmatprep.subr.mxu0 0.0
    %165 = vmatpush1.msra.mxu0 0.0
    %166 = vmatprep.subr.mxu0 0.0
    %167 = vmatpush1.msra.mxu0 0.0
    %168 = vmatprep.subr.mxu0 0.0
    %169 = vmatpush1.msra.mxu0 0.0
    %170 = vmatprep.subr.mxu0 0.0
    %171 = vmatpush1.msra.mxu0 0.0
    %172 = vmatprep.subr.mxu0 0.0
    %173 = vmatpush1.msra.mxu0 0.0
    %174 = vmatprep.subr.mxu0 0.0
    %175 = vmatpush1.msra.mxu0 0.0
    %176 = vmatprep.subr.mxu0 0.0
    %177 = vmatpush1.msra.mxu0 0.0
    %178 = vmatprep.subr.mxu0 0.0
    %179 = vmatpush1.msra.mxu0 0.0
    %180 = vmatprep.subr.mxu0 0.0
    %181 = vmatpush1.msra.mxu0 0.0
    %182 = vmatprep.subr.mxu0 0.0
    %183 = vmatpush1.msra.mxu0 0.0
    %184 = vmatprep.subr.mxu0 0.0
    %185 = vmatpush1.msra.mxu0 %v64
    %186 = vmatprep.subr.mxu0 0.0
    %187 = vmatpush1.msra.mxu0 %v63
    %188 = vmatprep.subr.mxu0 0.0
    %189 = vmatpush1.msra.mxu0 %v62
    %190 = vmatprep.subr.mxu0 0.0
    %191 = vmatpush1.msra.mxu0 %v61
    %192 = vmatprep.subr.mxu0 0.0
    %193 = vmatpush2.msra.mxu0 0.0
    %194 = vmatprep.subr.mxu0 0.0
    %195 = vmatpush2.msra.mxu0 0.0
    %196 = vmatprep.subr.mxu0 0.0
    %197 = vmatpush2.msra.mxu0 0.0
    %198 = vmatprep.subr.mxu0 0.0
    %199 = vmatpush2.msra.mxu0 0.0
    %200 = vmatprep.subr.mxu0 0.0
    %201 = vmatpush2.msra.mxu0 0.0
    %202 = vmatprep.subr.mxu0 0.0
    %203 = vmatpush2.msra.mxu0 0.0
    %204 = vmatprep.subr.mxu0 0.0
    %205 = vmatpush2.msra.mxu0 0.0
    %206 = vmatprep.subr.mxu0 0.0
    %207 = vmatpush2.msra.mxu0 0.0
    %208 = vmatprep.subr.mxu0 0.0
    %209 = vmatpush2.msra.mxu0 0.0
    %210 = vmatprep.subr.mxu0 0.0
    %211 = vmatpush2.msra.mxu0 0.0
    %212 = vmatprep.subr.mxu0 0.0
    %213 = vmatpush2.msra.mxu0 0.0
    %214 = vmatprep.subr.mxu0 0.0
    %215 = vmatpush2.msra.mxu0 0.0
    %216 = vmatprep.subr.mxu0 0.0
    %217 = vmatpush2.msra.mxu0 0.0
    %218 = vmatprep.subr.mxu0 0.0
    %219 = vmatpush2.msra.mxu0 0.0
    %220 = vmatprep.subr.mxu0 0.0
    %221 = vmatpush2.msra.mxu0 0.0
    %222 = vmatprep.subr.mxu0 0.0
    %223 = vmatpush2.msra.mxu0 0.0
    %224 = vmatprep.mubr.f32.mxu0 0.0
    %225 = vmatmul.mubr.f32.gmra.mxu0 %v158
    %v226 = vpop.f32.mrf.mxu0
    %v227 = vadd.f32 0.0, %v226
    %v228 = vpop.f32.mrf.mxu0
    %229 = vdwg.mxu0
    %v230 = vadd.f32 %v148, %v227
    %v231 = vxor.u32 %v230, 2147483648
    %v232 = vmul.f32 %v231, 1.442695
    %v233 = vpow.pop %v232
    %v234 = vadd.f32 %v233, 1.0
    %v235 = vrcp.pop %v234
    %v236 = vmul.f32 1.0, %v235
    %v237 = vtanh.pop %v230
    %v238 = vmul.f32 %v236, 0.0
    %240 = vrot.lane.b32.xlu0 %v237, 64
    %v241 = vpop.permute.xlu0 %240
    %v243 = vmul.f32 %v236, %v241
    %245 = vrot.lane.b32.xlu0 %v243, 32
    %v246 = vpop.permute.xlu0 %245
    %v248 = vadd.f32 %v238, %v246
    %v249 = vtanh.pop %v248
    %251 = vrot.lane.b32.xlu0 %v249, 64
    %v252 = vpop.permute.xlu0 %251
    %v254 = vmul.f32 %v236, %v252
    %256 = vrot.lane.b32.xlu0 %v254, 32
    %v257 = vpop.permute.xlu0 %256
    %vm259 = vcmask 254976
    %260 = vst.msk [vmem:[#allocation2] sm:$0x3] %vm259, %v257
    %v261 = vsel %vm156, %v257, 0
    %263 = vmatprep.subr.mxu0 0.0
    %264 = vmatpush1.msra.mxu0 0.0
    %265 = vmatprep.subr.mxu0 0.0
    %266 = vmatpush1.msra.mxu0 0.0
    %267 = vmatprep.subr.mxu0 0.0
    %268 = vmatpush1.msra.mxu0 0.0
    %269 = vmatprep.subr.mxu0 0.0
    %270 = vmatpush1.msra.mxu0 0.0
    %271 = vmatprep.subr.mxu0 0.0
    %272 = vmatpush1.msra.mxu0 0.0
    %273 = vmatprep.subr.mxu0 0.0
    %274 = vmatpush1.msra.mxu0 0.0
    %275 = vmatprep.subr.mxu0 0.0
    %276 = vmatpush1.msra.mxu0 0.0
    %277 = vmatprep.subr.mxu0 0.0
    %278 = vmatpush1.msra.mxu0 0.0
    %279 = vmatprep.subr.mxu0 0.0
    %280 = vmatpush1.msra.mxu0 0.0
    %281 = vmatprep.subr.mxu0 0.0
    %282 = vmatpush1.msra.mxu0 0.0
    %283 = vmatprep.subr.mxu0 0.0
    %284 = vmatpush1.msra.mxu0 0.0
    %285 = vmatprep.subr.mxu0 0.0
    %286 = vmatpush1.msra.mxu0 0.0
    %287 = vmatprep.subr.mxu0 0.0
    %288 = vmatpush1.msra.mxu0 %v64
    %289 = vmatprep.subr.mxu0 0.0
    %290 = vmatpush1.msra.mxu0 %v63
    %291 = vmatprep.subr.mxu0 0.0
    %292 = vmatpush1.msra.mxu0 %v62
    %293 = vmatprep.subr.mxu0 0.0
    %294 = vmatpush1.msra.mxu0 %v61
    %295 = vmatprep.subr.mxu0 0.0
    %296 = vmatpush2.msra.mxu0 0.0
    %297 = vmatprep.subr.mxu0 0.0
    %298 = vmatpush2.msra.mxu0 0.0
    %299 = vmatprep.subr.mxu0 0.0
    %300 = vmatpush2.msra.mxu0 0.0
    %301 = vmatprep.subr.mxu0 0.0
    %302 = vmatpush2.msra.mxu0 0.0
    %303 = vmatprep.subr.mxu0 0.0
    %304 = vmatpush2.msra.mxu0 0.0
    %305 = vmatprep.subr.mxu0 0.0
    %306 = vmatpush2.msra.mxu0 0.0
    %307 = vmatprep.subr.mxu0 0.0
    %308 = vmatpush2.msra.mxu0 0.0
    %309 = vmatprep.subr.mxu0 0.0
    %310 = vmatpush2.msra.mxu0 0.0
    %311 = vmatprep.subr.mxu0 0.0
    %312 = vmatpush2.msra.mxu0 0.0
    %313 = vmatprep.subr.mxu0 0.0
    %314 = vmatpush2.msra.mxu0 0.0
    %315 = vmatprep.subr.mxu0 0.0
    %316 = vmatpush2.msra.mxu0 0.0
    %317 = vmatprep.subr.mxu0 0.0
    %318 = vmatpush2.msra.mxu0 0.0
    %319 = vmatprep.subr.mxu0 0.0
    %320 = vmatpush2.msra.mxu0 0.0
    %321 = vmatprep.subr.mxu0 0.0
    %322 = vmatpush2.msra.mxu0 0.0
    %323 = vmatprep.subr.mxu0 0.0
    %324 = vmatpush2.msra.mxu0 0.0
    %325 = vmatprep.subr.mxu0 0.0
    %326 = vmatpush2.msra.mxu0 0.0
    %327 = vmatprep.mubr.f32.mxu0 0.0
    %328 = vmatmul.mubr.f32.gmra.mxu0 %v261
    %v329 = vpop.f32.mrf.mxu0
    %v330 = vadd.f32 0.0, %v329
    %v331 = vpop.f32.mrf.mxu0
    %332 = vdwg.mxu0
    %v334 = vrot.slane %v330, 6
    %v336 = vadd.f32 %v148, %v334
    %v337 = vxor.u32 %v336, 2147483648
    %v338 = vmul.f32 %v337, 1.442695
    %v339 = vpow.pop %v338
    %v340 = vadd.f32 %v339, 1.0
    %v341 = vrcp.pop %v340
    %v342 = vmul.f32 1.0, %v341
    %v343 = vtanh.pop %v336
    %v345 = vrot.slane %v248, 6
    %v347 = vmul.f32 %v342, %v345
    %349 = vrot.lane.b32.xlu0 %v343, 64
    %v350 = vpop.permute.xlu0 %349
    %v352 = vmul.f32 %v342, %v350
    %354 = vrot.lane.b32.xlu0 %v352, 32
    %v355 = vpop.permute.xlu0 %354
    %v357 = vadd.f32 %v347, %v355
    %v358 = vtanh.pop %v357
    %360 = vrot.lane.b32.xlu0 %v358, 64
    %v361 = vpop.permute.xlu0 %360
    %v363 = vmul.f32 %v342, %v361
    %365 = vrot.lane.b32.xlu0 %v363, 32
    %v366 = vpop.permute.xlu0 %365
    %vm368 = vcmask 257026
    %369 = vst.msk [vmem:[#allocation2] sm:$0xc] %vm368, %v366
    %v370 = vrot.slane %v363, 2
    %371 = vrot.lane.b32.xlu0 %v370, 32
    %v372 = vpop.permute.xlu0 %371
    %v373 = vsel %vm156, %v372, 0
    %375 = vmatprep.subr.mxu0 0.0
    %376 = vmatpush1.msra.mxu0 0.0
    %377 = vmatprep.subr.mxu0 0.0
    %378 = vmatpush1.msra.mxu0 0.0
    %379 = vmatprep.subr.mxu0 0.0
    %380 = vmatpush1.msra.mxu0 0.0
    %381 = vmatprep.subr.mxu0 0.0
    %382 = vmatpush1.msra.mxu0 0.0
    %383 = vmatprep.subr.mxu0 0.0
    %384 = vmatpush1.msra.mxu0 0.0
    %385 = vmatprep.subr.mxu0 0.0
    %386 = vmatpush1.msra.mxu0 0.0
    %387 = vmatprep.subr.mxu0 0.0
    %388 = vmatpush1.msra.mxu0 0.0
    %389 = vmatprep.subr.mxu0 0.0
    %390 = vmatpush1.msra.mxu0 0.0
    %391 = vmatprep.subr.mxu0 0.0
    %392 = vmatpush1.msra.mxu0 0.0
    %393 = vmatprep.subr.mxu0 0.0
    %394 = vmatpush1.msra.mxu0 0.0
    %395 = vmatprep.subr.mxu0 0.0
    %396 = vmatpush1.msra.mxu0 0.0
    %397 = vmatprep.subr.mxu0 0.0
    %398 = vmatpush1.msra.mxu0 0.0
    %399 = vmatprep.subr.mxu0 0.0
    %400 = vmatpush1.msra.mxu0 %v64
    %401 = vmatprep.subr.mxu0 0.0
    %402 = vmatpush1.msra.mxu0 %v63
    %403 = vmatprep.subr.mxu0 0.0
    %404 = vmatpush1.msra.mxu0 %v62
    %405 = vmatprep.subr.mxu0 0.0
    %406 = vmatpush1.msra.mxu0 %v61
    %407 = vmatprep.subr.mxu0 0.0
    %408 = vmatpush2.msra.mxu0 0.0
    %409 = vmatprep.subr.mxu0 0.0
    %410 = vmatpush2.msra.mxu0 0.0
    %411 = vmatprep.subr.mxu0 0.0
    %412 = vmatpush2.msra.mxu0 0.0
    %413 = vmatprep.subr.mxu0 0.0
    %414 = vmatpush2.msra.mxu0 0.0
    %415 = vmatprep.subr.mxu0 0.0
    %416 = vmatpush2.msra.mxu0 0.0
    %417 = vmatprep.subr.mxu0 0.0
    %418 = vmatpush2.msra.mxu0 0.0
    %419 = vmatprep.subr.mxu0 0.0
    %420 = vmatpush2.msra.mxu0 0.0
    %421 = vmatprep.subr.mxu0 0.0
    %422 = vmatpush2.msra.mxu0 0.0
    %423 = vmatprep.subr.mxu0 0.0
    %424 = vmatpush2.msra.mxu0 0.0
    %425 = vmatprep.subr.mxu0 0.0
    %426 = vmatpush2.msra.mxu0 0.0
    %427 = vmatprep.subr.mxu0 0.0
    %428 = vmatpush2.msra.mxu0 0.0
    %429 = vmatprep.subr.mxu0 0.0
    %430 = vmatpush2.msra.mxu0 0.0
    %431 = vmatprep.subr.mxu0 0.0
    %432 = vmatpush2.msra.mxu0 0.0
    %433 = vmatprep.subr.mxu0 0.0
    %434 = vmatpush2.msra.mxu0 0.0
    %435 = vmatprep.subr.mxu0 0.0
    %436 = vmatpush2.msra.mxu0 0.0
    %437 = vmatprep.subr.mxu0 0.0
    %438 = vmatpush2.msra.mxu0 0.0
    %439 = vmatprep.mubr.f32.mxu0 0.0
    %440 = vmatmul.mubr.f32.gmra.mxu0 %v373
    %v441 = vpop.f32.mrf.mxu0
    %v442 = vadd.f32 0.0, %v441
    %v443 = vpop.f32.mrf.mxu0
    %444 = vdwg.mxu0
    %v446 = vrot.slane %v442, 4
    %v448 = vadd.f32 %v148, %v446
    %v449 = vxor.u32 %v448, 2147483648
    %v450 = vmul.f32 %v449, 1.442695
    %v451 = vpow.pop %v450
    %v452 = vadd.f32 %v451, 1.0
    %v453 = vrcp.pop %v452
    %v454 = vmul.f32 1.0, %v453
    %v455 = vtanh.pop %v448
    %v457 = vrot.slane %v357, 6
    %v459 = vmul.f32 %v454, %v457
    %461 = vrot.lane.b32.xlu0 %v455, 64
    %v462 = vpop.permute.xlu0 %461
    %v464 = vmul.f32 %v454, %v462
    %466 = vrot.lane.b32.xlu0 %v464, 32
    %v467 = vpop.permute.xlu0 %466
    %v469 = vadd.f32 %v459, %v467
    %v470 = vtanh.pop %v469
    %472 = vrot.lane.b32.xlu0 %v470, 64
    %v473 = vpop.permute.xlu0 %472
    %v475 = vmul.f32 %v454, %v473
    %477 = vrot.lane.b32.xlu0 %v475, 32
    %v478 = vpop.permute.xlu0 %477
    %vm480 = vcmask 259076
    %481 = vst.msk [vmem:[#allocation2] sm:$0x30] %vm480, %v478
    %v482 = vrot.slane %v475, 4
    %483 = vrot.lane.b32.xlu0 %v482, 32
    %v484 = vpop.permute.xlu0 %483
    %v485 = vsel %vm156, %v484, 0
    %487 = vmatprep.subr.mxu0 0.0
    %488 = vmatpush1.msra.mxu0 0.0
    %489 = vmatprep.subr.mxu0 0.0
    %490 = vmatpush1.msra.mxu0 0.0
    %491 = vmatprep.subr.mxu0 0.0
    %492 = vmatpush1.msra.mxu0 0.0
    %493 = vmatprep.subr.mxu0 0.0
    %494 = vmatpush1.msra.mxu0 0.0
    %495 = vmatprep.subr.mxu0 0.0
    %496 = vmatpush1.msra.mxu0 0.0
    %497 = vmatprep.subr.mxu0 0.0
    %498 = vmatpush1.msra.mxu0 0.0
    %499 = vmatprep.subr.mxu0 0.0
    %500 = vmatpush1.msra.mxu0 0.0
    %501 = vmatprep.subr.mxu0 0.0
    %502 = vmatpush1.msra.mxu0 0.0
    %503 = vmatprep.subr.mxu0 0.0
    %504 = vmatpush1.msra.mxu0 0.0
    %505 = vmatprep.subr.mxu0 0.0
    %506 = vmatpush1.msra.mxu0 0.0
    %507 = vmatprep.subr.mxu0 0.0
    %508 = vmatpush1.msra.mxu0 0.0
    %509 = vmatprep.subr.mxu0 0.0
    %510 = vmatpush1.msra.mxu0 0.0
    %511 = vmatprep.subr.mxu0 0.0
    %512 = vmatpush1.msra.mxu0 %v64
    %513 = vmatprep.subr.mxu0 0.0
    %514 = vmatpush1.msra.mxu0 %v63
    %515 = vmatprep.subr.mxu0 0.0
    %516 = vmatpush1.msra.mxu0 %v62
    %517 = vmatprep.subr.mxu0 0.0
    %518 = vmatpush1.msra.mxu0 %v61
    %519 = vmatprep.subr.mxu0 0.0
    %520 = vmatpush2.msra.mxu0 0.0
    %521 = vmatprep.subr.mxu0 0.0
    %522 = vmatpush2.msra.mxu0 0.0
    %523 = vmatprep.subr.mxu0 0.0
    %524 = vmatpush2.msra.mxu0 0.0
    %525 = vmatprep.subr.mxu0 0.0
    %526 = vmatpush2.msra.mxu0 0.0
    %527 = vmatprep.subr.mxu0 0.0
    %528 = vmatpush2.msra.mxu0 0.0
    %529 = vmatprep.subr.mxu0 0.0
    %530 = vmatpush2.msra.mxu0 0.0
    %531 = vmatprep.subr.mxu0 0.0
    %532 = vmatpush2.msra.mxu0 0.0
    %533 = vmatprep.subr.mxu0 0.0
    %534 = vmatpush2.msra.mxu0 0.0
    %535 = vmatprep.subr.mxu0 0.0
    %536 = vmatpush2.msra.mxu0 0.0
    %537 = vmatprep.subr.mxu0 0.0
    %538 = vmatpush2.msra.mxu0 0.0
    %539 = vmatprep.subr.mxu0 0.0
    %540 = vmatpush2.msra.mxu0 0.0
    %541 = vmatprep.subr.mxu0 0.0
    %542 = vmatpush2.msra.mxu0 0.0
    %543 = vmatprep.subr.mxu0 0.0
    %544 = vmatpush2.msra.mxu0 0.0
    %545 = vmatprep.subr.mxu0 0.0
    %546 = vmatpush2.msra.mxu0 0.0
    %547 = vmatprep.subr.mxu0 0.0
    %548 = vmatpush2.msra.mxu0 0.0
    %549 = vmatprep.subr.mxu0 0.0
    %550 = vmatpush2.msra.mxu0 0.0
    %551 = vmatprep.mubr.f32.mxu0 0.0
    %552 = vmatmul.mubr.f32.gmra.mxu0 %v485
    %v553 = vpop.f32.mrf.mxu0
    %v554 = vadd.f32 0.0, %v553
    %v555 = vpop.f32.mrf.mxu0
    %556 = vdwg.mxu0
    %v558 = vrot.slane %v554, 2
    %v560 = vadd.f32 %v148, %v558
    %v561 = vxor.u32 %v560, 2147483648
    %v562 = vmul.f32 %v561, 1.442695
    %v563 = vpow.pop %v562
    %v564 = vadd.f32 %v563, 1.0
    %v565 = vrcp.pop %v564
    %v566 = vmul.f32 1.0, %v565
    %v567 = vtanh.pop %v560
    %v569 = vrot.slane %v469, 6
    %v571 = vmul.f32 %v566, %v569
    %573 = vrot.lane.b32.xlu0 %v567, 64
    %v574 = vpop.permute.xlu0 %573
    %v576 = vmul.f32 %v566, %v574
    %578 = vrot.lane.b32.xlu0 %v576, 32
    %v579 = vpop.permute.xlu0 %578
    %v581 = vadd.f32 %v571, %v579
    %v582 = vtanh.pop %v581
    %584 = vrot.lane.b32.xlu0 %v582, 64
    %v585 = vpop.permute.xlu0 %584
    %v587 = vmul.f32 %v566, %v585
    %589 = vrot.lane.b32.xlu0 %v587, 32
    %v590 = vpop.permute.xlu0 %589
    %vm592 = vcmask 261126
    %593 = vst.msk [vmem:[#allocation2] sm:$0xc0] %vm592, %v590
    %v594 = vrot.slane %v587, 6
    %595 = vrot.lane.b32.xlu0 %v594, 32
    %v596 = vpop.permute.xlu0 %595
    %v597 = vsel %vm156, %v596, 0
    %599 = vmatprep.subr.mxu0 0.0
    %600 = vmatpush1.msra.mxu0 0.0
    %601 = vmatprep.subr.mxu0 0.0
    %602 = vmatpush1.msra.mxu0 0.0
    %603 = vmatprep.subr.mxu0 0.0
    %604 = vmatpush1.msra.mxu0 0.0
    %605 = vmatprep.subr.mxu0 0.0
    %606 = vmatpush1.msra.mxu0 0.0
    %607 = vmatprep.subr.mxu0 0.0
    %608 = vmatpush1.msra.mxu0 0.0
    %609 = vmatprep.subr.mxu0 0.0
    %610 = vmatpush1.msra.mxu0 0.0
    %611 = vmatprep.subr.mxu0 0.0
    %612 = vmatpush1.msra.mxu0 0.0
    %613 = vmatprep.subr.mxu0 0.0
    %614 = vmatpush1.msra.mxu0 0.0
    %615 = vmatprep.subr.mxu0 0.0
    %616 = vmatpush1.msra.mxu0 0.0
    %617 = vmatprep.subr.mxu0 0.0
    %618 = vmatpush1.msra.mxu0 0.0
    %619 = vmatprep.subr.mxu0 0.0
    %620 = vmatpush1.msra.mxu0 0.0
    %621 = vmatprep.subr.mxu0 0.0
    %622 = vmatpush1.msra.mxu0 0.0
    %623 = vmatprep.subr.mxu0 0.0
    %624 = vmatpush1.msra.mxu0 %v64
    %625 = vmatprep.subr.mxu0 0.0
    %626 = vmatpush1.msra.mxu0 %v63
    %627 = vmatprep.subr.mxu0 0.0
    %628 = vmatpush1.msra.mxu0 %v62
    %629 = vmatprep.subr.mxu0 0.0
    %630 = vmatpush1.msra.mxu0 %v61
    %631 = vmatprep.subr.mxu0 0.0
    %632 = vmatpush2.msra.mxu0 0.0
    %633 = vmatprep.subr.mxu0 0.0
    %634 = vmatpush2.msra.mxu0 0.0
    %635 = vmatprep.subr.mxu0 0.0
    %636 = vmatpush2.msra.mxu0 0.0
    %637 = vmatprep.subr.mxu0 0.0
    %638 = vmatpush2.msra.mxu0 0.0
    %639 = vmatprep.subr.mxu0 0.0
    %640 = vmatpush2.msra.mxu0 0.0
    %641 = vmatprep.subr.mxu0 0.0
    %642 = vmatpush2.msra.mxu0 0.0
    %643 = vmatprep.subr.mxu0 0.0
    %644 = vmatpush2.msra.mxu0 0.0
    %645 = vmatprep.subr.mxu0 0.0
    %646 = vmatpush2.msra.mxu0 0.0
    %647 = vmatprep.subr.mxu0 0.0
    %648 = vmatpush2.msra.mxu0 0.0
    %649 = vmatprep.subr.mxu0 0.0
    %650 = vmatpush2.msra.mxu0 0.0
    %651 = vmatprep.subr.mxu0 0.0
    %652 = vmatpush2.msra.mxu0 0.0
    %653 = vmatprep.subr.mxu0 0.0
    %654 = vmatpush2.msra.mxu0 0.0
    %655 = vmatprep.subr.mxu0 0.0
    %656 = vmatpush2.msra.mxu0 0.0
    %657 = vmatprep.subr.mxu0 0.0
    %658 = vmatpush2.msra.mxu0 0.0
    %659 = vmatprep.subr.mxu0 0.0
    %660 = vmatpush2.msra.mxu0 0.0
    %661 = vmatprep.subr.mxu0 0.0
    %662 = vmatpush2.msra.mxu0 0.0
    %663 = vmatprep.mubr.f32.mxu0 0.0
    %664 = vmatmul.mubr.f32.gmra.mxu0 %v597
    %v665 = vpop.f32.mrf.mxu0
    %v666 = vadd.f32 0.0, %v665
    %v667 = vpop.f32.mrf.mxu0
    %668 = vdwg.mxu0
    %v669 = vadd.f32 %v153, %v666
    %v670 = vxor.u32 %v669, 2147483648
    %v671 = vmul.f32 %v670, 1.442695
    %v672 = vpow.pop %v671
    %v673 = vadd.f32 %v672, 1.0
    %v674 = vrcp.pop %v673
    %v675 = vmul.f32 1.0, %v674
    %v676 = vtanh.pop %v669
    %v678 = vrot.slane %v581, 6
    %v680 = vmul.f32 %v675, %v678
    %682 = vrot.lane.b32.xlu0 %v676, 64
    %v683 = vpop.permute.xlu0 %682
    %v685 = vmul.f32 %v675, %v683
    %687 = vrot.lane.b32.xlu0 %v685, 32
    %v688 = vpop.permute.xlu0 %687
    %v690 = vadd.f32 %v680, %v688
    %v691 = vtanh.pop %v690
    %693 = vrot.lane.b32.xlu0 %v691, 64
    %v694 = vpop.permute.xlu0 %693
    %v696 = vmul.f32 %v675, %v694
    %698 = vrot.lane.b32.xlu0 %v696, 32
    %v699 = vpop.permute.xlu0 %698
    %701 = vst.msk [vmem:[#allocation2 + $0x8] sm:$0x3] %vm259, %v699
    %v702 = vsel %vm156, %v699, 0
    %704 = vmatprep.subr.mxu0 0.0
    %705 = vmatpush1.msra.mxu0 0.0
    %706 = vmatprep.subr.mxu0 0.0
    %707 = vmatpush1.msra.mxu0 0.0
    %708 = vmatprep.subr.mxu0 0.0
    %709 = vmatpush1.msra.mxu0 0.0
    %710 = vmatprep.subr.mxu0 0.0
    %711 = vmatpush1.msra.mxu0 0.0
    %712 = vmatprep.subr.mxu0 0.0
    %713 = vmatpush1.msra.mxu0 0.0
    %714 = vmatprep.subr.mxu0 0.0
    %715 = vmatpush1.msra.mxu0 0.0
    %716 = vmatprep.subr.mxu0 0.0
    %717 = vmatpush1.msra.mxu0 0.0
    %718 = vmatprep.subr.mxu0 0.0
    %719 = vmatpush1.msra.mxu0 0.0
    %720 = vmatprep.subr.mxu0 0.0
    %721 = vmatpush1.msra.mxu0 0.0
    %722 = vmatprep.subr.mxu0 0.0
    %723 = vmatpush1.msra.mxu0 0.0
    %724 = vmatprep.subr.mxu0 0.0
    %725 = vmatpush1.msra.mxu0 0.0
    %726 = vmatprep.subr.mxu0 0.0
    %727 = vmatpush1.msra.mxu0 0.0
    %728 = vmatprep.subr.mxu0 0.0
    %729 = vmatpush1.msra.mxu0 %v64
    %730 = vmatprep.subr.mxu0 0.0
    %731 = vmatpush1.msra.mxu0 %v63
    %732 = vmatprep.subr.mxu0 0.0
    %733 = vmatpush1.msra.mxu0 %v62
    %734 = vmatprep.subr.mxu0 0.0
    %735 = vmatpush1.msra.mxu0 %v61
    %736 = vmatprep.subr.mxu0 0.0
    %737 = vmatpush2.msra.mxu0 0.0
    %738 = vmatprep.subr.mxu0 0.0
    %739 = vmatpush2.msra.mxu0 0.0
    %740 = vmatprep.subr.mxu0 0.0
    %741 = vmatpush2.msra.mxu0 0.0
    %742 = vmatprep.subr.mxu0 0.0
    %743 = vmatpush2.msra.mxu0 0.0
    %744 = vmatprep.subr.mxu0 0.0
    %745 = vmatpush2.msra.mxu0 0.0
    %746 = vmatprep.subr.mxu0 0.0
    %747 = vmatpush2.msra.mxu0 0.0
    %748 = vmatprep.subr.mxu0 0.0
    %749 = vmatpush2.msra.mxu0 0.0
    %750 = vmatprep.subr.mxu0 0.0
    %751 = vmatpush2.msra.mxu0 0.0
    %752 = vmatprep.subr.mxu0 0.0
    %753 = vmatpush2.msra.mxu0 0.0
    %754 = vmatprep.subr.mxu0 0.0
    %755 = vmatpush2.msra.mxu0 0.0
    %756 = vmatprep.subr.mxu0 0.0
    %757 = vmatpush2.msra.mxu0 0.0
    %758 = vmatprep.subr.mxu0 0.0
    %759 = vmatpush2.msra.mxu0 0.0
    %760 = vmatprep.subr.mxu0 0.0
    %761 = vmatpush2.msra.mxu0 0.0
    %762 = vmatprep.subr.mxu0 0.0
    %763 = vmatpush2.msra.mxu0 0.0
    %764 = vmatprep.subr.mxu0 0.0
    %765 = vmatpush2.msra.mxu0 0.0
    %766 = vmatprep.subr.mxu0 0.0
    %767 = vmatpush2.msra.mxu0 0.0
    %768 = vmatprep.mubr.f32.mxu0 0.0
    %769 = vmatmul.mubr.f32.gmra.mxu0 %v702
    %v770 = vpop.f32.mrf.mxu0
    %v771 = vadd.f32 0.0, %v770
    %v772 = vpop.f32.mrf.mxu0
    %773 = vdwg.mxu0
    %v775 = vrot.slane %v771, 6
    %v777 = vadd.f32 %v153, %v775
    %v778 = vxor.u32 %v777, 2147483648
    %v779 = vmul.f32 %v778, 1.442695
    %v780 = vpow.pop %v779
    %v781 = vadd.f32 %v780, 1.0
    %v782 = vrcp.pop %v781
    %v783 = vmul.f32 1.0, %v782
    %v784 = vtanh.pop %v777
    %v786 = vrot.slane %v690, 6
    %v788 = vmul.f32 %v783, %v786
    %790 = vrot.lane.b32.xlu0 %v784, 64
    %v791 = vpop.permute.xlu0 %790
    %v793 = vmul.f32 %v783, %v791
    %795 = vrot.lane.b32.xlu0 %v793, 32
    %v796 = vpop.permute.xlu0 %795
    %v798 = vadd.f32 %v788, %v796
    %v799 = vtanh.pop %v798
    %801 = vrot.lane.b32.xlu0 %v799, 64
    %v802 = vpop.permute.xlu0 %801
    %v804 = vmul.f32 %v783, %v802
    %806 = vrot.lane.b32.xlu0 %v804, 32
    %v807 = vpop.permute.xlu0 %806
    %809 = vst.msk [vmem:[#allocation2 + $0x8] sm:$0xc] %vm368, %v807
    %v810 = vrot.slane %v804, 2
    %811 = vrot.lane.b32.xlu0 %v810, 32
    %v812 = vpop.permute.xlu0 %811
    %v813 = vsel %vm156, %v812, 0
    %815 = vmatprep.subr.mxu0 0.0
    %816 = vmatpush1.msra.mxu0 0.0
    %817 = vmatprep.subr.mxu0 0.0
    %818 = vmatpush1.msra.mxu0 0.0
    %819 = vmatprep.subr.mxu0 0.0
    %820 = vmatpush1.msra.mxu0 0.0
    %821 = vmatprep.subr.mxu0 0.0
    %822 = vmatpush1.msra.mxu0 0.0
    %823 = vmatprep.subr.mxu0 0.0
    %824 = vmatpush1.msra.mxu0 0.0
    %825 = vmatprep.subr.mxu0 0.0
    %826 = vmatpush1.msra.mxu0 0.0
    %827 = vmatprep.subr.mxu0 0.0
    %828 = vmatpush1.msra.mxu0 0.0
    %829 = vmatprep.subr.mxu0 0.0
    %830 = vmatpush1.msra.mxu0 0.0
    %831 = vmatprep.subr.mxu0 0.0
    %832 = vmatpush1.msra.mxu0 0.0
    %833 = vmatprep.subr.mxu0 0.0
    %834 = vmatpush1.msra.mxu0 0.0
    %835 = vmatprep.subr.mxu0 0.0
    %836 = vmatpush1.msra.mxu0 0.0
    %837 = vmatprep.subr.mxu0 0.0
    %838 = vmatpush1.msra.mxu0 0.0
    %839 = vmatprep.subr.mxu0 0.0
    %840 = vmatpush1.msra.mxu0 %v64
    %841 = vmatprep.subr.mxu0 0.0
    %842 = vmatpush1.msra.mxu0 %v63
    %843 = vmatprep.subr.mxu0 0.0
    %844 = vmatpush1.msra.mxu0 %v62
    %845 = vmatprep.subr.mxu0 0.0
    %846 = vmatpush1.msra.mxu0 %v61
    %847 = vmatprep.subr.mxu0 0.0
    %848 = vmatpush2.msra.mxu0 0.0
    %849 = vmatprep.subr.mxu0 0.0
    %850 = vmatpush2.msra.mxu0 0.0
    %851 = vmatprep.subr.mxu0 0.0
    %852 = vmatpush2.msra.mxu0 0.0
    %853 = vmatprep.subr.mxu0 0.0
    %854 = vmatpush2.msra.mxu0 0.0
    %855 = vmatprep.subr.mxu0 0.0
    %856 = vmatpush2.msra.mxu0 0.0
    %857 = vmatprep.subr.mxu0 0.0
    %858 = vmatpush2.msra.mxu0 0.0
    %859 = vmatprep.subr.mxu0 0.0
    %860 = vmatpush2.msra.mxu0 0.0
    %861 = vmatprep.subr.mxu0 0.0
    %862 = vmatpush2.msra.mxu0 0.0
    %863 = vmatprep.subr.mxu0 0.0
    %864 = vmatpush2.msra.mxu0 0.0
    %865 = vmatprep.subr.mxu0 0.0
    %866 = vmatpush2.msra.mxu0 0.0
    %867 = vmatprep.subr.mxu0 0.0
    %868 = vmatpush2.msra.mxu0 0.0
    %869 = vmatprep.subr.mxu0 0.0
    %870 = vmatpush2.msra.mxu0 0.0
    %871 = vmatprep.subr.mxu0 0.0
    %872 = vmatpush2.msra.mxu0 0.0
    %873 = vmatprep.subr.mxu0 0.0
    %874 = vmatpush2.msra.mxu0 0.0
    %875 = vmatprep.subr.mxu0 0.0
    %876 = vmatpush2.msra.mxu0 0.0
    %877 = vmatprep.subr.mxu0 0.0
    %878 = vmatpush2.msra.mxu0 0.0
    %879 = vmatprep.mubr.f32.mxu0 0.0
    %880 = vmatmul.mubr.f32.gmra.mxu0 %v813
    %v881 = vpop.f32.mrf.mxu0
    %v882 = vadd.f32 0.0, %v881
    %v883 = vpop.f32.mrf.mxu0
    %884 = vdwg.mxu0
    %v886 = vrot.slane %v882, 4
    %v888 = vadd.f32 %v153, %v886
    %v889 = vxor.u32 %v888, 2147483648
    %v890 = vmul.f32 %v889, 1.442695
    %v891 = vpow.pop %v890
    %v892 = vadd.f32 %v891, 1.0
    %v893 = vrcp.pop %v892
    %v894 = vmul.f32 1.0, %v893
    %v895 = vtanh.pop %v888
    %v897 = vrot.slane %v798, 6
    %v899 = vmul.f32 %v894, %v897
    %901 = vrot.lane.b32.xlu0 %v895, 64
    %v902 = vpop.permute.xlu0 %901
    %v904 = vmul.f32 %v894, %v902
    %906 = vrot.lane.b32.xlu0 %v904, 32
    %v907 = vpop.permute.xlu0 %906
    %v909 = vadd.f32 %v899, %v907
    %v910 = vtanh.pop %v909
    %912 = vrot.lane.b32.xlu0 %v910, 64
    %v913 = vpop.permute.xlu0 %912
    %v915 = vmul.f32 %v894, %v913
    %917 = vrot.lane.b32.xlu0 %v915, 32
    %v918 = vpop.permute.xlu0 %917
    %920 = vst.msk [vmem:[#allocation2 + $0x8] sm:$0x30] %vm480, %v918
    %v921 = vrot.slane %v915, 4
    %922 = vrot.lane.b32.xlu0 %v921, 32
    %v923 = vpop.permute.xlu0 %922
    %v924 = vsel %vm156, %v923, 0
    %926 = vmatprep.subr.mxu0 0.0
    %927 = vmatpush1.msra.mxu0 0.0
    %928 = vmatprep.subr.mxu0 0.0
    %929 = vmatpush1.msra.mxu0 0.0
    %930 = vmatprep.subr.mxu0 0.0
    %931 = vmatpush1.msra.mxu0 0.0
    %932 = vmatprep.subr.mxu0 0.0
    %933 = vmatpush1.msra.mxu0 0.0
    %934 = vmatprep.subr.mxu0 0.0
    %935 = vmatpush1.msra.mxu0 0.0
    %936 = vmatprep.subr.mxu0 0.0
    %937 = vmatpush1.msra.mxu0 0.0
    %938 = vmatprep.subr.mxu0 0.0
    %939 = vmatpush1.msra.mxu0 0.0
    %940 = vmatprep.subr.mxu0 0.0
    %941 = vmatpush1.msra.mxu0 0.0
    %942 = vmatprep.subr.mxu0 0.0
    %943 = vmatpush1.msra.mxu0 0.0
    %944 = vmatprep.subr.mxu0 0.0
    %945 = vmatpush1.msra.mxu0 0.0
    %946 = vmatprep.subr.mxu0 0.0
    %947 = vmatpush1.msra.mxu0 0.0
    %948 = vmatprep.subr.mxu0 0.0
    %949 = vmatpush1.msra.mxu0 0.0
    %950 = vmatprep.subr.mxu0 0.0
    %951 = vmatpush1.msra.mxu0 %v64
    %952 = vmatprep.subr.mxu0 0.0
    %953 = vmatpush1.msra.mxu0 %v63
    %954 = vmatprep.subr.mxu0 0.0
    %955 = vmatpush1.msra.mxu0 %v62
    %956 = vmatprep.subr.mxu0 0.0
    %957 = vmatpush1.msra.mxu0 %v61
    %958 = vmatprep.subr.mxu0 0.0
    %959 = vmatpush2.msra.mxu0 0.0
    %960 = vmatprep.subr.mxu0 0.0
    %961 = vmatpush2.msra.mxu0 0.0
    %962 = vmatprep.subr.mxu0 0.0
    %963 = vmatpush2.msra.mxu0 0.0
    %964 = vmatprep.subr.mxu0 0.0
    %965 = vmatpush2.msra.mxu0 0.0
    %966 = vmatprep.subr.mxu0 0.0
    %967 = vmatpush2.msra.mxu0 0.0
    %968 = vmatprep.subr.mxu0 0.0
    %969 = vmatpush2.msra.mxu0 0.0
    %970 = vmatprep.subr.mxu0 0.0
    %971 = vmatpush2.msra.mxu0 0.0
    %972 = vmatprep.subr.mxu0 0.0
    %973 = vmatpush2.msra.mxu0 0.0
    %974 = vmatprep.subr.mxu0 0.0
    %975 = vmatpush2.msra.mxu0 0.0
    %976 = vmatprep.subr.mxu0 0.0
    %977 = vmatpush2.msra.mxu0 0.0
    %978 = vmatprep.subr.mxu0 0.0
    %979 = vmatpush2.msra.mxu0 0.0
    %980 = vmatprep.subr.mxu0 0.0
    %981 = vmatpush2.msra.mxu0 0.0
    %982 = vmatprep.subr.mxu0 0.0
    %983 = vmatpush2.msra.mxu0 0.0
    %984 = vmatprep.subr.mxu0 0.0
    %985 = vmatpush2.msra.mxu0 0.0
    %986 = vmatprep.subr.mxu0 0.0
    %987 = vmatpush2.msra.mxu0 0.0
    %988 = vmatprep.subr.mxu0 0.0
    %989 = vmatpush2.msra.mxu0 0.0
    %990 = vmatprep.mubr.f32.mxu0 0.0
    %991 = vmatmul.mubr.f32.gmra.mxu0 %v924
    %v992 = vpop.f32.mrf.mxu0
    %v993 = vadd.f32 0.0, %v992
    %v994 = vpop.f32.mrf.mxu0
    %995 = vdwg.mxu0
    %v997 = vrot.slane %v993, 2
    %v999 = vadd.f32 %v153, %v997
    %v1000 = vxor.u32 %v999, 2147483648
    %v1001 = vmul.f32 %v1000, 1.442695
    %v1002 = vpow.pop %v1001
    %v1003 = vadd.f32 %v1002, 1.0
    %v1004 = vrcp.pop %v1003
    %v1005 = vmul.f32 1.0, %v1004
    %v1006 = vtanh.pop %v999
    %v1008 = vrot.slane %v909, 6
    %v1010 = vmul.f32 %v1005, %v1008
    %1012 = vrot.lane.b32.xlu0 %v1006, 64
    %v1013 = vpop.permute.xlu0 %1012
    %v1015 = vmul.f32 %v1005, %v1013
    %1017 = vrot.lane.b32.xlu0 %v1015, 32
    %v1018 = vpop.permute.xlu0 %1017
    %v1020 = vadd.f32 %v1010, %v1018
    %v1021 = vtanh.pop %v1020
    %1023 = vrot.lane.b32.xlu0 %v1021, 64
    %v1024 = vpop.permute.xlu0 %1023
    %v1026 = vmul.f32 %v1005, %v1024
    %1028 = vrot.lane.b32.xlu0 %v1026, 32
    %v1029 = vpop.permute.xlu0 %1028
    %1031 = vst.msk [vmem:[#allocation2 + $0x8] sm:$0xc0] %vm592, %v1029
    %v1032 = vld [vmem:[%s4] sm:$0xff]
    %v1033 = vld [vmem:[%s4 + $0x8] sm:$0xff]
    %v1034 = vld [vmem:[%s4 + $0x10] sm:$0xff]
    %v1035 = vld [vmem:[%s4 + $0x18] sm:$0xff]
    %v1036 = vld [vmem:[#allocation3] sm:$0xff]
    %v1037 = vld [vmem:[#allocation3 + $0x8] sm:$0xff]
    %v1038 = vld [vmem:[#allocation3 + $0x10] sm:$0xff]
    %v1039 = vld [vmem:[#allocation3 + $0x18] sm:$0xff]
    %v1040 = vld [vmem:[%s6] sm:$0x1]
    %v1041 = vld [vmem:[#allocation2] sm:$0xff]
    %v1042 = vld [vmem:[#allocation2 + $0x8] sm:$0xff]
    %v1044 = vlaneseq
    %v1045 = vshrl.u32 %v1044, 7
    %v1046 = vsub.s32 0, %v1045
    %v1047 = vrot.slane %v1040, %v1046
    %v1050 = vsel %vm156, %v1041, 0
    %v1053 = vsel %vm156, %v1042, 0
    %1055 = vmatprep.subr.mxu0 0.0
    %1056 = vmatpush1.msra.mxu0 0.0
    %1057 = vmatprep.subr.mxu0 0.0
    %1058 = vmatpush1.msra.mxu0 0.0
    %1059 = vmatprep.subr.mxu0 0.0
    %1060 = vmatpush1.msra.mxu0 0.0
    %1061 = vmatprep.subr.mxu0 0.0
    %1062 = vmatpush1.msra.mxu0 0.0
    %1063 = vmatprep.subr.mxu0 0.0
    %1064 = vmatpush1.msra.mxu0 0.0
    %1065 = vmatprep.subr.mxu0 0.0
    %1066 = vmatpush1.msra.mxu0 0.0
    %1067 = vmatprep.subr.mxu0 0.0
    %1068 = vmatpush1.msra.mxu0 0.0
    %1069 = vmatprep.subr.mxu0 0.0
    %1070 = vmatpush1.msra.mxu0 0.0
    %1071 = vmatprep.subr.mxu0 0.0
    %1072 = vmatpush1.msra.mxu0 0.0
    %1073 = vmatprep.subr.mxu0 0.0
    %1074 = vmatpush1.msra.mxu0 0.0
    %1075 = vmatprep.subr.mxu0 0.0
    %1076 = vmatpush1.msra.mxu0 0.0
    %1077 = vmatprep.subr.mxu0 0.0
    %1078 = vmatpush1.msra.mxu0 0.0
    %1079 = vmatprep.subr.mxu0 0.0
    %1080 = vmatpush1.msra.mxu0 %v1035
    %1081 = vmatprep.subr.mxu0 0.0
    %1082 = vmatpush1.msra.mxu0 %v1034
    %1083 = vmatprep.subr.mxu0 0.0
    %1084 = vmatpush1.msra.mxu0 %v1033
    %1085 = vmatprep.subr.mxu0 0.0
    %1086 = vmatpush1.msra.mxu0 %v1032
    %1087 = vmatprep.subr.mxu0 0.0
    %1088 = vmatpush2.msra.mxu0 0.0
    %1089 = vmatprep.subr.mxu0 0.0
    %1090 = vmatpush2.msra.mxu0 0.0
    %1091 = vmatprep.subr.mxu0 0.0
    %1092 = vmatpush2.msra.mxu0 0.0
    %1093 = vmatprep.subr.mxu0 0.0
    %1094 = vmatpush2.msra.mxu0 0.0
    %1095 = vmatprep.subr.mxu0 0.0
    %1096 = vmatpush2.msra.mxu0 0.0
    %1097 = vmatprep.subr.mxu0 0.0
    %1098 = vmatpush2.msra.mxu0 0.0
    %1099 = vmatprep.subr.mxu0 0.0
    %1100 = vmatpush2.msra.mxu0 0.0
    %1101 = vmatprep.subr.mxu0 0.0
    %1102 = vmatpush2.msra.mxu0 0.0
    %1103 = vmatprep.subr.mxu0 0.0
    %1104 = vmatpush2.msra.mxu0 0.0
    %1105 = vmatprep.subr.mxu0 0.0
    %1106 = vmatpush2.msra.mxu0 0.0
    %1107 = vmatprep.subr.mxu0 0.0
    %1108 = vmatpush2.msra.mxu0 0.0
    %1109 = vmatprep.subr.mxu0 0.0
    %1110 = vmatpush2.msra.mxu0 0.0
    %1111 = vmatprep.subr.mxu0 0.0
    %1112 = vmatpush2.msra.mxu0 0.0
    %1113 = vmatprep.subr.mxu0 0.0
    %1114 = vmatpush2.msra.mxu0 0.0
    %1115 = vmatprep.subr.mxu0 0.0
    %1116 = vmatpush2.msra.mxu0 0.0
    %1117 = vmatprep.subr.mxu0 0.0
    %1118 = vmatpush2.msra.mxu0 0.0
    %1119 = vmatprep.mubr.f32.mxu0 0.0
    %1120 = vmatmul.mubr.f32.gmra.mxu0 %v1050
    %v1121 = vpop.f32.mrf.mxu0
    %v1122 = vadd.f32 %v1047, %v1121
    %v1123 = vpop.f32.mrf.mxu0
    %1124 = vmatprep.mubr.f32.mxu0 0.0
    %1125 = vmatmul.mubr.f32.gmra.mxu0 %v1053
    %v1126 = vpop.f32.mrf.mxu0
    %v1127 = vadd.f32 %v1047, %v1126
    %v1128 = vpop.f32.mrf.mxu0
    %1129 = vdwg.mxu0
    %1130 = vmatprep.subr.mxu0 0.0
    %1131 = vmatpush1.msra.mxu0 0.0
    %1132 = vmatprep.subr.mxu0 0.0
    %1133 = vmatpush1.msra.mxu0 0.0
    %1134 = vmatprep.subr.mxu0 0.0
    %1135 = vmatpush1.msra.mxu0 0.0
    %1136 = vmatprep.subr.mxu0 0.0
    %1137 = vmatpush1.msra.mxu0 0.0
    %1138 = vmatprep.subr.mxu0 0.0
    %1139 = vmatpush1.msra.mxu0 0.0
    %1140 = vmatprep.subr.mxu0 0.0
    %1141 = vmatpush1.msra.mxu0 0.0
    %1142 = vmatprep.subr.mxu0 0.0
    %1143 = vmatpush1.msra.mxu0 0.0
    %1144 = vmatprep.subr.mxu0 0.0
    %1145 = vmatpush1.msra.mxu0 0.0
    %1146 = vmatprep.subr.mxu0 0.0
    %1147 = vmatpush1.msra.mxu0 0.0
    %1148 = vmatprep.subr.mxu0 0.0
    %1149 = vmatpush1.msra.mxu0 0.0
    %1150 = vmatprep.subr.mxu0 0.0
    %1151 = vmatpush1.msra.mxu0 0.0
    %1152 = vmatprep.subr.mxu0 0.0
    %1153 = vmatpush1.msra.mxu0 0.0
    %1154 = vmatprep.subr.mxu0 0.0
    %1155 = vmatpush1.msra.mxu0 %v1039
    %1156 = vmatprep.subr.mxu0 0.0
    %1157 = vmatpush1.msra.mxu0 %v1038
    %1158 = vmatprep.subr.mxu0 0.0
    %1159 = vmatpush1.msra.mxu0 %v1037
    %1160 = vmatprep.subr.mxu0 0.0
    %1161 = vmatpush1.msra.mxu0 %v1036
    %1162 = vmatprep.subr.mxu0 0.0
    %1163 = vmatpush2.msra.mxu0 0.0
    %1164 = vmatprep.subr.mxu0 0.0
    %1165 = vmatpush2.msra.mxu0 0.0
    %1166 = vmatprep.subr.mxu0 0.0
    %1167 = vmatpush2.msra.mxu0 0.0
    %1168 = vmatprep.subr.mxu0 0.0
    %1169 = vmatpush2.msra.mxu0 0.0
    %1170 = vmatprep.subr.mxu0 0.0
    %1171 = vmatpush2.msra.mxu0 0.0
    %1172 = vmatprep.subr.mxu0 0.0
    %1173 = vmatpush2.msra.mxu0 0.0
    %1174 = vmatprep.subr.mxu0 0.0
    %1175 = vmatpush2.msra.mxu0 0.0
    %1176 = vmatprep.subr.mxu0 0.0
    %1177 = vmatpush2.msra.mxu0 0.0
    %1178 = vmatprep.subr.mxu0 0.0
    %1179 = vmatpush2.msra.mxu0 0.0
    %1180 = vmatprep.subr.mxu0 0.0
    %1181 = vmatpush2.msra.mxu0 0.0
    %1182 = vmatprep.subr.mxu0 0.0
    %1183 = vmatpush2.msra.mxu0 0.0
    %1184 = vmatprep.subr.mxu0 0.0
    %1185 = vmatpush2.msra.mxu0 0.0
    %1186 = vmatprep.subr.mxu0 0.0
    %1187 = vmatpush2.msra.mxu0 0.0
    %1188 = vmatprep.subr.mxu0 0.0
    %1189 = vmatpush2.msra.mxu0 0.0
    %1190 = vmatprep.subr.mxu0 0.0
    %1191 = vmatpush2.msra.mxu0 0.0
    %1192 = vmatprep.subr.mxu0 0.0
    %1193 = vmatpush2.msra.mxu0 0.0
    %1194 = vmatprep.mubr.f32.mxu0 0.0
    %1195 = vmatmul.mubr.f32.gmra.mxu0 %v158
    %v1196 = vpop.f32.mrf.mxu0
    %v1197 = vadd.f32 0.0, %v1196
    %v1198 = vpop.f32.mrf.mxu0
    %1199 = vdwg.mxu0
    %v1200 = vadd.f32 %v1122, %v1197
    %v1201 = vxor.u32 %v1200, 2147483648
    %v1202 = vmul.f32 %v1201, 1.442695
    %v1203 = vpow.pop %v1202
    %v1204 = vadd.f32 %v1203, 1.0
    %v1205 = vrcp.pop %v1204
    %v1206 = vmul.f32 1.0, %v1205
    %v1207 = vtanh.pop %v1200
    %v1208 = vmul.f32 %v1206, 0.0
    %1210 = vrot.lane.b32.xlu0 %v1207, 64
    %v1211 = vpop.permute.xlu0 %1210
    %v1213 = vmul.f32 %v1206, %v1211
    %1215 = vrot.lane.b32.xlu0 %v1213, 32
    %v1216 = vpop.permute.xlu0 %1215
    %v1218 = vadd.f32 %v1208, %v1216
    %v1219 = vtanh.pop %v1218
    %1221 = vrot.lane.b32.xlu0 %v1219, 64
    %v1222 = vpop.permute.xlu0 %1221
    %v1224 = vmul.f32 %v1206, %v1222
    %1226 = vrot.lane.b32.xlu0 %v1224, 32
    %v1227 = vpop.permute.xlu0 %1226
    %v1228 = vsel %vm156, %v1227, 0
    %1230 = vmatprep.subr.mxu0 0.0
    %1231 = vmatpush1.msra.mxu0 0.0
    %1232 = vmatprep.subr.mxu0 0.0
    %1233 = vmatpush1.msra.mxu0 0.0
    %1234 = vmatprep.subr.mxu0 0.0
    %1235 = vmatpush1.msra.mxu0 0.0
    %1236 = vmatprep.subr.mxu0 0.0
    %1237 = vmatpush1.msra.mxu0 0.0
    %1238 = vmatprep.subr.mxu0 0.0
    %1239 = vmatpush1.msra.mxu0 0.0
    %1240 = vmatprep.subr.mxu0 0.0
    %1241 = vmatpush1.msra.mxu0 0.0
    %1242 = vmatprep.subr.mxu0 0.0
    %1243 = vmatpush1.msra.mxu0 0.0
    %1244 = vmatprep.subr.mxu0 0.0
    %1245 = vmatpush1.msra.mxu0 0.0
    %1246 = vmatprep.subr.mxu0 0.0
    %1247 = vmatpush1.msra.mxu0 0.0
    %1248 = vmatprep.subr.mxu0 0.0
    %1249 = vmatpush1.msra.mxu0 0.0
    %1250 = vmatprep.subr.mxu0 0.0
    %1251 = vmatpush1.msra.mxu0 0.0
    %1252 = vmatprep.subr.mxu0 0.0
    %1253 = vmatpush1.msra.mxu0 0.0
    %1254 = vmatprep.subr.mxu0 0.0
    %1255 = vmatpush1.msra.mxu0 %v1039
    %1256 = vmatprep.subr.mxu0 0.0
    %1257 = vmatpush1.msra.mxu0 %v1038
    %1258 = vmatprep.subr.mxu0 0.0
    %1259 = vmatpush1.msra.mxu0 %v1037
    %1260 = vmatprep.subr.mxu0 0.0
    %1261 = vmatpush1.msra.mxu0 %v1036
    %1262 = vmatprep.subr.mxu0 0.0
    %1263 = vmatpush2.msra.mxu0 0.0
    %1264 = vmatprep.subr.mxu0 0.0
    %1265 = vmatpush2.msra.mxu0 0.0
    %1266 = vmatprep.subr.mxu0 0.0
    %1267 = vmatpush2.msra.mxu0 0.0
    %1268 = vmatprep.subr.mxu0 0.0
    %1269 = vmatpush2.msra.mxu0 0.0
    %1270 = vmatprep.subr.mxu0 0.0
    %1271 = vmatpush2.msra.mxu0 0.0
    %1272 = vmatprep.subr.mxu0 0.0
    %1273 = vmatpush2.msra.mxu0 0.0
    %1274 = vmatprep.subr.mxu0 0.0
    %1275 = vmatpush2.msra.mxu0 0.0
    %1276 = vmatprep.subr.mxu0 0.0
    %1277 = vmatpush2.msra.mxu0 0.0
    %1278 = vmatprep.subr.mxu0 0.0
    %1279 = vmatpush2.msra.mxu0 0.0
    %1280 = vmatprep.subr.mxu0 0.0
    %1281 = vmatpush2.msra.mxu0 0.0
    %1282 = vmatprep.subr.mxu0 0.0
    %1283 = vmatpush2.msra.mxu0 0.0
    %1284 = vmatprep.subr.mxu0 0.0
    %1285 = vmatpush2.msra.mxu0 0.0
    %1286 = vmatprep.subr.mxu0 0.0
    %1287 = vmatpush2.msra.mxu0 0.0
    %1288 = vmatprep.subr.mxu0 0.0
    %1289 = vmatpush2.msra.mxu0 0.0
    %1290 = vmatprep.subr.mxu0 0.0
    %1291 = vmatpush2.msra.mxu0 0.0
    %1292 = vmatprep.subr.mxu0 0.0
    %1293 = vmatpush2.msra.mxu0 0.0
    %1294 = vmatprep.mubr.f32.mxu0 0.0
    %1295 = vmatmul.mubr.f32.gmra.mxu0 %v1228
    %v1296 = vpop.f32.mrf.mxu0
    %v1297 = vadd.f32 0.0, %v1296
    %v1298 = vpop.f32.mrf.mxu0
    %1299 = vdwg.mxu0
    %v1301 = vrot.slane %v1297, 6
    %v1303 = vadd.f32 %v1122, %v1301
    %v1304 = vxor.u32 %v1303, 2147483648
    %v1305 = vmul.f32 %v1304, 1.442695
    %v1306 = vpow.pop %v1305
    %v1307 = vadd.f32 %v1306, 1.0
    %v1308 = vrcp.pop %v1307
    %v1309 = vmul.f32 1.0, %v1308
    %v1310 = vtanh.pop %v1303
    %v1312 = vrot.slane %v1218, 6
    %v1314 = vmul.f32 %v1309, %v1312
    %1316 = vrot.lane.b32.xlu0 %v1310, 64
    %v1317 = vpop.permute.xlu0 %1316
    %v1319 = vmul.f32 %v1309, %v1317
    %1321 = vrot.lane.b32.xlu0 %v1319, 32
    %v1322 = vpop.permute.xlu0 %1321
    %v1324 = vadd.f32 %v1314, %v1322
    %v1325 = vtanh.pop %v1324
    %1327 = vrot.lane.b32.xlu0 %v1325, 64
    %v1328 = vpop.permute.xlu0 %1327
    %v1330 = vmul.f32 %v1309, %v1328
    %v1332 = vrot.slane %v1330, 2
    %1333 = vrot.lane.b32.xlu0 %v1332, 32
    %v1334 = vpop.permute.xlu0 %1333
    %v1335 = vsel %vm156, %v1334, 0
    %1337 = vmatprep.subr.mxu0 0.0
    %1338 = vmatpush1.msra.mxu0 0.0
    %1339 = vmatprep.subr.mxu0 0.0
    %1340 = vmatpush1.msra.mxu0 0.0
    %1341 = vmatprep.subr.mxu0 0.0
    %1342 = vmatpush1.msra.mxu0 0.0
    %1343 = vmatprep.subr.mxu0 0.0
    %1344 = vmatpush1.msra.mxu0 0.0
    %1345 = vmatprep.subr.mxu0 0.0
    %1346 = vmatpush1.msra.mxu0 0.0
    %1347 = vmatprep.subr.mxu0 0.0
    %1348 = vmatpush1.msra.mxu0 0.0
    %1349 = vmatprep.subr.mxu0 0.0
    %1350 = vmatpush1.msra.mxu0 0.0
    %1351 = vmatprep.subr.mxu0 0.0
    %1352 = vmatpush1.msra.mxu0 0.0
    %1353 = vmatprep.subr.mxu0 0.0
    %1354 = vmatpush1.msra.mxu0 0.0
    %1355 = vmatprep.subr.mxu0 0.0
    %1356 = vmatpush1.msra.mxu0 0.0
    %1357 = vmatprep.subr.mxu0 0.0
    %1358 = vmatpush1.msra.mxu0 0.0
    %1359 = vmatprep.subr.mxu0 0.0
    %1360 = vmatpush1.msra.mxu0 0.0
    %1361 = vmatprep.subr.mxu0 0.0
    %1362 = vmatpush1.msra.mxu0 %v1039
    %1363 = vmatprep.subr.mxu0 0.0
    %1364 = vmatpush1.msra.mxu0 %v1038
    %1365 = vmatprep.subr.mxu0 0.0
    %1366 = vmatpush1.msra.mxu0 %v1037
    %1367 = vmatprep.subr.mxu0 0.0
    %1368 = vmatpush1.msra.mxu0 %v1036
    %1369 = vmatprep.subr.mxu0 0.0
    %1370 = vmatpush2.msra.mxu0 0.0
    %1371 = vmatprep.subr.mxu0 0.0
    %1372 = vmatpush2.msra.mxu0 0.0
    %1373 = vmatprep.subr.mxu0 0.0
    %1374 = vmatpush2.msra.mxu0 0.0
    %1375 = vmatprep.subr.mxu0 0.0
    %1376 = vmatpush2.msra.mxu0 0.0
    %1377 = vmatprep.subr.mxu0 0.0
    %1378 = vmatpush2.msra.mxu0 0.0
    %1379 = vmatprep.subr.mxu0 0.0
    %1380 = vmatpush2.msra.mxu0 0.0
    %1381 = vmatprep.subr.mxu0 0.0
    %1382 = vmatpush2.msra.mxu0 0.0
    %1383 = vmatprep.subr.mxu0 0.0
    %1384 = vmatpush2.msra.mxu0 0.0
    %1385 = vmatprep.subr.mxu0 0.0
    %1386 = vmatpush2.msra.mxu0 0.0
    %1387 = vmatprep.subr.mxu0 0.0
    %1388 = vmatpush2.msra.mxu0 0.0
    %1389 = vmatprep.subr.mxu0 0.0
    %1390 = vmatpush2.msra.mxu0 0.0
    %1391 = vmatprep.subr.mxu0 0.0
    %1392 = vmatpush2.msra.mxu0 0.0
    %1393 = vmatprep.subr.mxu0 0.0
    %1394 = vmatpush2.msra.mxu0 0.0
    %1395 = vmatprep.subr.mxu0 0.0
    %1396 = vmatpush2.msra.mxu0 0.0
    %1397 = vmatprep.subr.mxu0 0.0
    %1398 = vmatpush2.msra.mxu0 0.0
    %1399 = vmatprep.subr.mxu0 0.0
    %1400 = vmatpush2.msra.mxu0 0.0
    %1401 = vmatprep.mubr.f32.mxu0 0.0
    %1402 = vmatmul.mubr.f32.gmra.mxu0 %v1335
    %v1403 = vpop.f32.mrf.mxu0
    %v1404 = vadd.f32 0.0, %v1403
    %v1405 = vpop.f32.mrf.mxu0
    %1406 = vdwg.mxu0
    %v1408 = vrot.slane %v1404, 4
    %v1410 = vadd.f32 %v1122, %v1408
    %v1411 = vxor.u32 %v1410, 2147483648
    %v1412 = vmul.f32 %v1411, 1.442695
    %v1413 = vpow.pop %v1412
    %v1414 = vadd.f32 %v1413, 1.0
    %v1415 = vrcp.pop %v1414
    %v1416 = vmul.f32 1.0, %v1415
    %v1417 = vtanh.pop %v1410
    %v1419 = vrot.slane %v1324, 6
    %v1421 = vmul.f32 %v1416, %v1419
    %1423 = vrot.lane.b32.xlu0 %v1417, 64
    %v1424 = vpop.permute.xlu0 %1423
    %v1426 = vmul.f32 %v1416, %v1424
    %1428 = vrot.lane.b32.xlu0 %v1426, 32
    %v1429 = vpop.permute.xlu0 %1428
    %v1431 = vadd.f32 %v1421, %v1429
    %v1432 = vtanh.pop %v1431
    %1434 = vrot.lane.b32.xlu0 %v1432, 64
    %v1435 = vpop.permute.xlu0 %1434
    %v1437 = vmul.f32 %v1416, %v1435
    %v1439 = vrot.slane %v1437, 4
    %1440 = vrot.lane.b32.xlu0 %v1439, 32
    %v1441 = vpop.permute.xlu0 %1440
    %v1442 = vsel %vm156, %v1441, 0
    %1444 = vmatprep.subr.mxu0 0.0
    %1445 = vmatpush1.msra.mxu0 0.0
    %1446 = vmatprep.subr.mxu0 0.0
    %1447 = vmatpush1.msra.mxu0 0.0
    %1448 = vmatprep.subr.mxu0 0.0
    %1449 = vmatpush1.msra.mxu0 0.0
    %1450 = vmatprep.subr.mxu0 0.0
    %1451 = vmatpush1.msra.mxu0 0.0
    %1452 = vmatprep.subr.mxu0 0.0
    %1453 = vmatpush1.msra.mxu0 0.0
    %1454 = vmatprep.subr.mxu0 0.0
    %1455 = vmatpush1.msra.mxu0 0.0
    %1456 = vmatprep.subr.mxu0 0.0
    %1457 = vmatpush1.msra.mxu0 0.0
    %1458 = vmatprep.subr.mxu0 0.0
    %1459 = vmatpush1.msra.mxu0 0.0
    %1460 = vmatprep.subr.mxu0 0.0
    %1461 = vmatpush1.msra.mxu0 0.0
    %1462 = vmatprep.subr.mxu0 0.0
    %1463 = vmatpush1.msra.mxu0 0.0
    %1464 = vmatprep.subr.mxu0 0.0
    %1465 = vmatpush1.msra.mxu0 0.0
    %1466 = vmatprep.subr.mxu0 0.0
    %1467 = vmatpush1.msra.mxu0 0.0
    %1468 = vmatprep.subr.mxu0 0.0
    %1469 = vmatpush1.msra.mxu0 %v1039
    %1470 = vmatprep.subr.mxu0 0.0
    %1471 = vmatpush1.msra.mxu0 %v1038
    %1472 = vmatprep.subr.mxu0 0.0
    %1473 = vmatpush1.msra.mxu0 %v1037
    %1474 = vmatprep.subr.mxu0 0.0
    %1475 = vmatpush1.msra.mxu0 %v1036
    %1476 = vmatprep.subr.mxu0 0.0
    %1477 = vmatpush2.msra.mxu0 0.0
    %1478 = vmatprep.subr.mxu0 0.0
    %1479 = vmatpush2.msra.mxu0 0.0
    %1480 = vmatprep.subr.mxu0 0.0
    %1481 = vmatpush2.msra.mxu0 0.0
    %1482 = vmatprep.subr.mxu0 0.0
    %1483 = vmatpush2.msra.mxu0 0.0
    %1484 = vmatprep.subr.mxu0 0.0
    %1485 = vmatpush2.msra.mxu0 0.0
    %1486 = vmatprep.subr.mxu0 0.0
    %1487 = vmatpush2.msra.mxu0 0.0
    %1488 = vmatprep.subr.mxu0 0.0
    %1489 = vmatpush2.msra.mxu0 0.0
    %1490 = vmatprep.subr.mxu0 0.0
    %1491 = vmatpush2.msra.mxu0 0.0
    %1492 = vmatprep.subr.mxu0 0.0
    %1493 = vmatpush2.msra.mxu0 0.0
    %1494 = vmatprep.subr.mxu0 0.0
    %1495 = vmatpush2.msra.mxu0 0.0
    %1496 = vmatprep.subr.mxu0 0.0
    %1497 = vmatpush2.msra.mxu0 0.0
    %1498 = vmatprep.subr.mxu0 0.0
    %1499 = vmatpush2.msra.mxu0 0.0
    %1500 = vmatprep.subr.mxu0 0.0
    %1501 = vmatpush2.msra.mxu0 0.0
    %1502 = vmatprep.subr.mxu0 0.0
    %1503 = vmatpush2.msra.mxu0 0.0
    %1504 = vmatprep.subr.mxu0 0.0
    %1505 = vmatpush2.msra.mxu0 0.0
    %1506 = vmatprep.subr.mxu0 0.0
    %1507 = vmatpush2.msra.mxu0 0.0
    %1508 = vmatprep.mubr.f32.mxu0 0.0
    %1509 = vmatmul.mubr.f32.gmra.mxu0 %v1442
    %v1510 = vpop.f32.mrf.mxu0
    %v1511 = vadd.f32 0.0, %v1510
    %v1512 = vpop.f32.mrf.mxu0
    %1513 = vdwg.mxu0
    %v1515 = vrot.slane %v1511, 2
    %v1517 = vadd.f32 %v1122, %v1515
    %v1518 = vxor.u32 %v1517, 2147483648
    %v1519 = vmul.f32 %v1518, 1.442695
    %v1520 = vpow.pop %v1519
    %v1521 = vadd.f32 %v1520, 1.0
    %v1522 = vrcp.pop %v1521
    %v1523 = vmul.f32 1.0, %v1522
    %v1524 = vtanh.pop %v1517
    %v1526 = vrot.slane %v1431, 6
    %v1528 = vmul.f32 %v1523, %v1526
    %1530 = vrot.lane.b32.xlu0 %v1524, 64
    %v1531 = vpop.permute.xlu0 %1530
    %v1533 = vmul.f32 %v1523, %v1531
    %1535 = vrot.lane.b32.xlu0 %v1533, 32
    %v1536 = vpop.permute.xlu0 %1535
    %v1538 = vadd.f32 %v1528, %v1536
    %v1539 = vtanh.pop %v1538
    %1541 = vrot.lane.b32.xlu0 %v1539, 64
    %v1542 = vpop.permute.xlu0 %1541
    %v1544 = vmul.f32 %v1523, %v1542
    %v1546 = vrot.slane %v1544, 6
    %1547 = vrot.lane.b32.xlu0 %v1546, 32
    %v1548 = vpop.permute.xlu0 %1547
    %v1549 = vsel %vm156, %v1548, 0
    %1551 = vmatprep.subr.mxu0 0.0
    %1552 = vmatpush1.msra.mxu0 0.0
    %1553 = vmatprep.subr.mxu0 0.0
    %1554 = vmatpush1.msra.mxu0 0.0
    %1555 = vmatprep.subr.mxu0 0.0
    %1556 = vmatpush1.msra.mxu0 0.0
    %1557 = vmatprep.subr.mxu0 0.0
    %1558 = vmatpush1.msra.mxu0 0.0
    %1559 = vmatprep.subr.mxu0 0.0
    %1560 = vmatpush1.msra.mxu0 0.0
    %1561 = vmatprep.subr.mxu0 0.0
    %1562 = vmatpush1.msra.mxu0 0.0
    %1563 = vmatprep.subr.mxu0 0.0
    %1564 = vmatpush1.msra.mxu0 0.0
    %1565 = vmatprep.subr.mxu0 0.0
    %1566 = vmatpush1.msra.mxu0 0.0
    %1567 = vmatprep.subr.mxu0 0.0
    %1568 = vmatpush1.msra.mxu0 0.0
    %1569 = vmatprep.subr.mxu0 0.0
    %1570 = vmatpush1.msra.mxu0 0.0
    %1571 = vmatprep.subr.mxu0 0.0
    %1572 = vmatpush1.msra.mxu0 0.0
    %1573 = vmatprep.subr.mxu0 0.0
    %1574 = vmatpush1.msra.mxu0 0.0
    %1575 = vmatprep.subr.mxu0 0.0
    %1576 = vmatpush1.msra.mxu0 %v1039
    %1577 = vmatprep.subr.mxu0 0.0
    %1578 = vmatpush1.msra.mxu0 %v1038
    %1579 = vmatprep.subr.mxu0 0.0
    %1580 = vmatpush1.msra.mxu0 %v1037
    %1581 = vmatprep.subr.mxu0 0.0
    %1582 = vmatpush1.msra.mxu0 %v1036
    %1583 = vmatprep.subr.mxu0 0.0
    %1584 = vmatpush2.msra.mxu0 0.0
    %1585 = vmatprep.subr.mxu0 0.0
    %1586 = vmatpush2.msra.mxu0 0.0
    %1587 = vmatprep.subr.mxu0 0.0
    %1588 = vmatpush2.msra.mxu0 0.0
    %1589 = vmatprep.subr.mxu0 0.0
    %1590 = vmatpush2.msra.mxu0 0.0
    %1591 = vmatprep.subr.mxu0 0.0
    %1592 = vmatpush2.msra.mxu0 0.0
    %1593 = vmatprep.subr.mxu0 0.0
    %1594 = vmatpush2.msra.mxu0 0.0
    %1595 = vmatprep.subr.mxu0 0.0
    %1596 = vmatpush2.msra.mxu0 0.0
    %1597 = vmatprep.subr.mxu0 0.0
    %1598 = vmatpush2.msra.mxu0 0.0
    %1599 = vmatprep.subr.mxu0 0.0
    %1600 = vmatpush2.msra.mxu0 0.0
    %1601 = vmatprep.subr.mxu0 0.0
    %1602 = vmatpush2.msra.mxu0 0.0
    %1603 = vmatprep.subr.mxu0 0.0
    %1604 = vmatpush2.msra.mxu0 0.0
    %1605 = vmatprep.subr.mxu0 0.0
    %1606 = vmatpush2.msra.mxu0 0.0
    %1607 = vmatprep.subr.mxu0 0.0
    %1608 = vmatpush2.msra.mxu0 0.0
    %1609 = vmatprep.subr.mxu0 0.0
    %1610 = vmatpush2.msra.mxu0 0.0
    %1611 = vmatprep.subr.mxu0 0.0
    %1612 = vmatpush2.msra.mxu0 0.0
    %1613 = vmatprep.subr.mxu0 0.0
    %1614 = vmatpush2.msra.mxu0 0.0
    %1615 = vmatprep.mubr.f32.mxu0 0.0
    %1616 = vmatmul.mubr.f32.gmra.mxu0 %v1549
    %v1617 = vpop.f32.mrf.mxu0
    %v1618 = vadd.f32 0.0, %v1617
    %v1619 = vpop.f32.mrf.mxu0
    %1620 = vdwg.mxu0
    %v1621 = vadd.f32 %v1127, %v1618
    %v1622 = vxor.u32 %v1621, 2147483648
    %v1623 = vmul.f32 %v1622, 1.442695
    %v1624 = vpow.pop %v1623
    %v1625 = vadd.f32 %v1624, 1.0
    %v1626 = vrcp.pop %v1625
    %v1627 = vmul.f32 1.0, %v1626
    %v1628 = vtanh.pop %v1621
    %v1630 = vrot.slane %v1538, 6
    %v1632 = vmul.f32 %v1627, %v1630
    %1634 = vrot.lane.b32.xlu0 %v1628, 64
    %v1635 = vpop.permute.xlu0 %1634
    %v1637 = vmul.f32 %v1627, %v1635
    %1639 = vrot.lane.b32.xlu0 %v1637, 32
    %v1640 = vpop.permute.xlu0 %1639
    %v1642 = vadd.f32 %v1632, %v1640
    %v1643 = vtanh.pop %v1642
    %1645 = vrot.lane.b32.xlu0 %v1643, 64
    %v1646 = vpop.permute.xlu0 %1645
    %v1648 = vmul.f32 %v1627, %v1646
    %1650 = vrot.lane.b32.xlu0 %v1648, 32
    %v1651 = vpop.permute.xlu0 %1650
    %v1652 = vsel %vm156, %v1651, 0
    %1654 = vmatprep.subr.mxu0 0.0
    %1655 = vmatpush1.msra.mxu0 0.0
    %1656 = vmatprep.subr.mxu0 0.0
    %1657 = vmatpush1.msra.mxu0 0.0
    %1658 = vmatprep.subr.mxu0 0.0
    %1659 = vmatpush1.msra.mxu0 0.0
    %1660 = vmatprep.subr.mxu0 0.0
    %1661 = vmatpush1.msra.mxu0 0.0
    %1662 = vmatprep.subr.mxu0 0.0
    %1663 = vmatpush1.msra.mxu0 0.0
    %1664 = vmatprep.subr.mxu0 0.0
    %1665 = vmatpush1.msra.mxu0 0.0
    %1666 = vmatprep.subr.mxu0 0.0
    %1667 = vmatpush1.msra.mxu0 0.0
    %1668 = vmatprep.subr.mxu0 0.0
    %1669 = vmatpush1.msra.mxu0 0.0
    %1670 = vmatprep.subr.mxu0 0.0
    %1671 = vmatpush1.msra.mxu0 0.0
    %1672 = vmatprep.subr.mxu0 0.0
    %1673 = vmatpush1.msra.mxu0 0.0
    %1674 = vmatprep.subr.mxu0 0.0
    %1675 = vmatpush1.msra.mxu0 0.0
    %1676 = vmatprep.subr.mxu0 0.0
    %1677 = vmatpush1.msra.mxu0 0.0
    %1678 = vmatprep.subr.mxu0 0.0
    %1679 = vmatpush1.msra.mxu0 %v1039
    %1680 = vmatprep.subr.mxu0 0.0
    %1681 = vmatpush1.msra.mxu0 %v1038
    %1682 = vmatprep.subr.mxu0 0.0
    %1683 = vmatpush1.msra.mxu0 %v1037
    %1684 = vmatprep.subr.mxu0 0.0
    %1685 = vmatpush1.msra.mxu0 %v1036
    %1686 = vmatprep.subr.mxu0 0.0
    %1687 = vmatpush2.msra.mxu0 0.0
    %1688 = vmatprep.subr.mxu0 0.0
    %1689 = vmatpush2.msra.mxu0 0.0
    %1690 = vmatprep.subr.mxu0 0.0
    %1691 = vmatpush2.msra.mxu0 0.0
    %1692 = vmatprep.subr.mxu0 0.0
    %1693 = vmatpush2.msra.mxu0 0.0
    %1694 = vmatprep.subr.mxu0 0.0
    %1695 = vmatpush2.msra.mxu0 0.0
    %1696 = vmatprep.subr.mxu0 0.0
    %1697 = vmatpush2.msra.mxu0 0.0
    %1698 = vmatprep.subr.mxu0 0.0
    %1699 = vmatpush2.msra.mxu0 0.0
    %1700 = vmatprep.subr.mxu0 0.0
    %1701 = vmatpush2.msra.mxu0 0.0
    %1702 = vmatprep.subr.mxu0 0.0
    %1703 = vmatpush2.msra.mxu0 0.0
    %1704 = vmatprep.subr.mxu0 0.0
    %1705 = vmatpush2.msra.mxu0 0.0
    %1706 = vmatprep.subr.mxu0 0.0
    %1707 = vmatpush2.msra.mxu0 0.0
    %1708 = vmatprep.subr.mxu0 0.0
    %1709 = vmatpush2.msra.mxu0 0.0
    %1710 = vmatprep.subr.mxu0 0.0
    %1711 = vmatpush2.msra.mxu0 0.0
    %1712 = vmatprep.subr.mxu0 0.0
    %1713 = vmatpush2.msra.mxu0 0.0
    %1714 = vmatprep.subr.mxu0 0.0
    %1715 = vmatpush2.msra.mxu0 0.0
    %1716 = vmatprep.subr.mxu0 0.0
    %1717 = vmatpush2.msra.mxu0 0.0
    %1718 = vmatprep.mubr.f32.mxu0 0.0
    %1719 = vmatmul.mubr.f32.gmra.mxu0 %v1652
    %v1720 = vpop.f32.mrf.mxu0
    %v1721 = vadd.f32 0.0, %v1720
    %v1722 = vpop.f32.mrf.mxu0
    %1723 = vdwg.mxu0
    %v1725 = vrot.slane %v1721, 6
    %v1727 = vadd.f32 %v1127, %v1725
    %v1728 = vxor.u32 %v1727, 2147483648
    %v1729 = vmul.f32 %v1728, 1.442695
    %v1730 = vpow.pop %v1729
    %v1731 = vadd.f32 %v1730, 1.0
    %v1732 = vrcp.pop %v1731
    %v1733 = vmul.f32 1.0, %v1732
    %v1734 = vtanh.pop %v1727
    %v1736 = vrot.slane %v1642, 6
    %v1738 = vmul.f32 %v1733, %v1736
    %1740 = vrot.lane.b32.xlu0 %v1734, 64
    %v1741 = vpop.permute.xlu0 %1740
    %v1743 = vmul.f32 %v1733, %v1741
    %1745 = vrot.lane.b32.xlu0 %v1743, 32
    %v1746 = vpop.permute.xlu0 %1745
    %v1748 = vadd.f32 %v1738, %v1746
    %v1749 = vtanh.pop %v1748
    %1751 = vrot.lane.b32.xlu0 %v1749, 64
    %v1752 = vpop.permute.xlu0 %1751
    %v1754 = vmul.f32 %v1733, %v1752
    %v1756 = vrot.slane %v1754, 2
    %1757 = vrot.lane.b32.xlu0 %v1756, 32
    %v1758 = vpop.permute.xlu0 %1757
    %v1759 = vsel %vm156, %v1758, 0
    %1761 = vmatprep.subr.mxu0 0.0
    %1762 = vmatpush1.msra.mxu0 0.0
    %1763 = vmatprep.subr.mxu0 0.0
    %1764 = vmatpush1.msra.mxu0 0.0
    %1765 = vmatprep.subr.mxu0 0.0
    %1766 = vmatpush1.msra.mxu0 0.0
    %1767 = vmatprep.subr.mxu0 0.0
    %1768 = vmatpush1.msra.mxu0 0.0
    %1769 = vmatprep.subr.mxu0 0.0
    %1770 = vmatpush1.msra.mxu0 0.0
    %1771 = vmatprep.subr.mxu0 0.0
    %1772 = vmatpush1.msra.mxu0 0.0
    %1773 = vmatprep.subr.mxu0 0.0
    %1774 = vmatpush1.msra.mxu0 0.0
    %1775 = vmatprep.subr.mxu0 0.0
    %1776 = vmatpush1.msra.mxu0 0.0
    %1777 = vmatprep.subr.mxu0 0.0
    %1778 = vmatpush1.msra.mxu0 0.0
    %1779 = vmatprep.subr.mxu0 0.0
    %1780 = vmatpush1.msra.mxu0 0.0
    %1781 = vmatprep.subr.mxu0 0.0
    %1782 = vmatpush1.msra.mxu0 0.0
    %1783 = vmatprep.subr.mxu0 0.0
    %1784 = vmatpush1.msra.mxu0 0.0
    %1785 = vmatprep.subr.mxu0 0.0
    %1786 = vmatpush1.msra.mxu0 %v1039
    %1787 = vmatprep.subr.mxu0 0.0
    %1788 = vmatpush1.msra.mxu0 %v1038
    %1789 = vmatprep.subr.mxu0 0.0
    %1790 = vmatpush1.msra.mxu0 %v1037
    %1791 = vmatprep.subr.mxu0 0.0
    %1792 = vmatpush1.msra.mxu0 %v1036
    %1793 = vmatprep.subr.mxu0 0.0
    %1794 = vmatpush2.msra.mxu0 0.0
    %1795 = vmatprep.subr.mxu0 0.0
    %1796 = vmatpush2.msra.mxu0 0.0
    %1797 = vmatprep.subr.mxu0 0.0
    %1798 = vmatpush2.msra.mxu0 0.0
    %1799 = vmatprep.subr.mxu0 0.0
    %1800 = vmatpush2.msra.mxu0 0.0
    %1801 = vmatprep.subr.mxu0 0.0
    %1802 = vmatpush2.msra.mxu0 0.0
    %1803 = vmatprep.subr.mxu0 0.0
    %1804 = vmatpush2.msra.mxu0 0.0
    %1805 = vmatprep.subr.mxu0 0.0
    %1806 = vmatpush2.msra.mxu0 0.0
    %1807 = vmatprep.subr.mxu0 0.0
    %1808 = vmatpush2.msra.mxu0 0.0
    %1809 = vmatprep.subr.mxu0 0.0
    %1810 = vmatpush2.msra.mxu0 0.0
    %1811 = vmatprep.subr.mxu0 0.0
    %1812 = vmatpush2.msra.mxu0 0.0
    %1813 = vmatprep.subr.mxu0 0.0
    %1814 = vmatpush2.msra.mxu0 0.0
    %1815 = vmatprep.subr.mxu0 0.0
    %1816 = vmatpush2.msra.mxu0 0.0
    %1817 = vmatprep.subr.mxu0 0.0
    %1818 = vmatpush2.msra.mxu0 0.0
    %1819 = vmatprep.subr.mxu0 0.0
    %1820 = vmatpush2.msra.mxu0 0.0
    %1821 = vmatprep.subr.mxu0 0.0
    %1822 = vmatpush2.msra.mxu0 0.0
    %1823 = vmatprep.subr.mxu0 0.0
    %1824 = vmatpush2.msra.mxu0 0.0
    %1825 = vmatprep.mubr.f32.mxu0 0.0
    %1826 = vmatmul.mubr.f32.gmra.mxu0 %v1759
    %v1827 = vpop.f32.mrf.mxu0
    %v1828 = vadd.f32 0.0, %v1827
    %v1829 = vpop.f32.mrf.mxu0
    %1830 = vdwg.mxu0
    %v1832 = vrot.slane %v1828, 4
    %v1834 = vadd.f32 %v1127, %v1832
    %v1835 = vxor.u32 %v1834, 2147483648
    %v1836 = vmul.f32 %v1835, 1.442695
    %v1837 = vpow.pop %v1836
    %v1838 = vadd.f32 %v1837, 1.0
    %v1839 = vrcp.pop %v1838
    %v1840 = vmul.f32 1.0, %v1839
    %v1841 = vtanh.pop %v1834
    %v1843 = vrot.slane %v1748, 6
    %v1845 = vmul.f32 %v1840, %v1843
    %1847 = vrot.lane.b32.xlu0 %v1841, 64
    %v1848 = vpop.permute.xlu0 %1847
    %v1850 = vmul.f32 %v1840, %v1848
    %1852 = vrot.lane.b32.xlu0 %v1850, 32
    %v1853 = vpop.permute.xlu0 %1852
    %v1855 = vadd.f32 %v1845, %v1853
    %v1856 = vtanh.pop %v1855
    %1858 = vrot.lane.b32.xlu0 %v1856, 64
    %v1859 = vpop.permute.xlu0 %1858
    %v1861 = vmul.f32 %v1840, %v1859
    %v1863 = vrot.slane %v1861, 4
    %1864 = vrot.lane.b32.xlu0 %v1863, 32
    %v1865 = vpop.permute.xlu0 %1864
    %v1866 = vsel %vm156, %v1865, 0
    %1868 = vmatprep.subr.mxu0 0.0
    %1869 = vmatpush1.msra.mxu0 0.0
    %1870 = vmatprep.subr.mxu0 0.0
    %1871 = vmatpush1.msra.mxu0 0.0
    %1872 = vmatprep.subr.mxu0 0.0
    %1873 = vmatpush1.msra.mxu0 0.0
    %1874 = vmatprep.subr.mxu0 0.0
    %1875 = vmatpush1.msra.mxu0 0.0
    %1876 = vmatprep.subr.mxu0 0.0
    %1877 = vmatpush1.msra.mxu0 0.0
    %1878 = vmatprep.subr.mxu0 0.0
    %1879 = vmatpush1.msra.mxu0 0.0
    %1880 = vmatprep.subr.mxu0 0.0
    %1881 = vmatpush1.msra.mxu0 0.0
    %1882 = vmatprep.subr.mxu0 0.0
    %1883 = vmatpush1.msra.mxu0 0.0
    %1884 = vmatprep.subr.mxu0 0.0
    %1885 = vmatpush1.msra.mxu0 0.0
    %1886 = vmatprep.subr.mxu0 0.0
    %1887 = vmatpush1.msra.mxu0 0.0
    %1888 = vmatprep.subr.mxu0 0.0
    %1889 = vmatpush1.msra.mxu0 0.0
    %1890 = vmatprep.subr.mxu0 0.0
    %1891 = vmatpush1.msra.mxu0 0.0
    %1892 = vmatprep.subr.mxu0 0.0
    %1893 = vmatpush1.msra.mxu0 %v1039
    %1894 = vmatprep.subr.mxu0 0.0
    %1895 = vmatpush1.msra.mxu0 %v1038
    %1896 = vmatprep.subr.mxu0 0.0
    %1897 = vmatpush1.msra.mxu0 %v1037
    %1898 = vmatprep.subr.mxu0 0.0
    %1899 = vmatpush1.msra.mxu0 %v1036
    %1900 = vmatprep.subr.mxu0 0.0
    %1901 = vmatpush2.msra.mxu0 0.0
    %1902 = vmatprep.subr.mxu0 0.0
    %1903 = vmatpush2.msra.mxu0 0.0
    %1904 = vmatprep.subr.mxu0 0.0
    %1905 = vmatpush2.msra.mxu0 0.0
    %1906 = vmatprep.subr.mxu0 0.0
    %1907 = vmatpush2.msra.mxu0 0.0
    %1908 = vmatprep.subr.mxu0 0.0
    %1909 = vmatpush2.msra.mxu0 0.0
    %1910 = vmatprep.subr.mxu0 0.0
    %1911 = vmatpush2.msra.mxu0 0.0
    %1912 = vmatprep.subr.mxu0 0.0
    %1913 = vmatpush2.msra.mxu0 0.0
    %1914 = vmatprep.subr.mxu0 0.0
    %1915 = vmatpush2.msra.mxu0 0.0
    %1916 = vmatprep.subr.mxu0 0.0
    %1917 = vmatpush2.msra.mxu0 0.0
    %1918 = vmatprep.subr.mxu0 0.0
    %1919 = vmatpush2.msra.mxu0 0.0
    %1920 = vmatprep.subr.mxu0 0.0
    %1921 = vmatpush2.msra.mxu0 0.0
    %1922 = vmatprep.subr.mxu0 0.0
    %1923 = vmatpush2.msra.mxu0 0.0
    %1924 = vmatprep.subr.mxu0 0.0
    %1925 = vmatpush2.msra.mxu0 0.0
    %1926 = vmatprep.subr.mxu0 0.0
    %1927 = vmatpush2.msra.mxu0 0.0
    %1928 = vmatprep.subr.mxu0 0.0
    %1929 = vmatpush2.msra.mxu0 0.0
    %1930 = vmatprep.subr.mxu0 0.0
    %1931 = vmatpush2.msra.mxu0 0.0
    %1932 = vmatprep.mubr.f32.mxu0 0.0
    %1933 = vmatmul.mubr.f32.gmra.mxu0 %v1866
    %v1934 = vpop.f32.mrf.mxu0
    %v1935 = vadd.f32 0.0, %v1934
    %v1936 = vpop.f32.mrf.mxu0
    %1937 = vdwg.mxu0
    %v1939 = vrot.slane %v1935, 2
    %v1941 = vadd.f32 %v1127, %v1939
    %v1942 = vxor.u32 %v1941, 2147483648
    %v1943 = vmul.f32 %v1942, 1.442695
    %v1944 = vpow.pop %v1943
    %v1945 = vadd.f32 %v1944, 1.0
    %v1946 = vrcp.pop %v1945
    %v1947 = vmul.f32 1.0, %v1946
    %v1948 = vtanh.pop %v1941
    %v1950 = vrot.slane %v1855, 6
    %v1952 = vmul.f32 %v1947, %v1950
    %1954 = vrot.lane.b32.xlu0 %v1948, 64
    %v1955 = vpop.permute.xlu0 %1954
    %v1957 = vmul.f32 %v1947, %v1955
    %1959 = vrot.lane.b32.xlu0 %v1957, 32
    %v1960 = vpop.permute.xlu0 %1959
    %v1962 = vadd.f32 %v1952, %v1960
    %v1963 = vtanh.pop %v1962
    %1965 = vrot.lane.b32.xlu0 %v1963, 64
    %v1966 = vpop.permute.xlu0 %1965
    %v1968 = vmul.f32 %v1947, %v1966
    %v1969 = vld [vmem:[%s7] sm:$0xff]
    %v1970 = vld [vmem:[%s7 + $0x8] sm:$0xff]
    %v1971 = vld [vmem:[%s7 + $0x10] sm:$0xff]
    %v1972 = vld [vmem:[%s7 + $0x18] sm:$0xff]
    %v1973 = vld [vmem:[#allocation6] sm:$0x1]
    %v1975 = vlaneseq
    %v1976 = vshrl.u32 %v1975, 7
    %v1977 = vsub.s32 0, %v1976
    %v1978 = vrot.slane %v1973, %v1977
    %v1981 = vrot.slane %v1968, 6
    %1982 = vrot.lane.b32.xlu0 %v1981, 32
    %v1983 = vpop.permute.xlu0 %1982
    %v1984 = vsel %vm156, %v1983, 0
    %1986 = vmatprep.subr.mxu0 0.0
    %1987 = vmatpush1.msra.mxu0 0.0
    %1988 = vmatprep.subr.mxu0 0.0
    %1989 = vmatpush1.msra.mxu0 0.0
    %1990 = vmatprep.subr.mxu0 0.0
    %1991 = vmatpush1.msra.mxu0 0.0
    %1992 = vmatprep.subr.mxu0 0.0
    %1993 = vmatpush1.msra.mxu0 0.0
    %1994 = vmatprep.subr.mxu0 0.0
    %1995 = vmatpush1.msra.mxu0 0.0
    %1996 = vmatprep.subr.mxu0 0.0
    %1997 = vmatpush1.msra.mxu0 0.0
    %1998 = vmatprep.subr.mxu0 0.0
    %1999 = vmatpush1.msra.mxu0 0.0
    %2000 = vmatprep.subr.mxu0 0.0
    %2001 = vmatpush1.msra.mxu0 0.0
    %2002 = vmatprep.subr.mxu0 0.0
    %2003 = vmatpush1.msra.mxu0 0.0
    %2004 = vmatprep.subr.mxu0 0.0
    %2005 = vmatpush1.msra.mxu0 0.0
    %2006 = vmatprep.subr.mxu0 0.0
    %2007 = vmatpush1.msra.mxu0 0.0
    %2008 = vmatprep.subr.mxu0 0.0
    %2009 = vmatpush1.msra.mxu0 0.0
    %2010 = vmatprep.subr.mxu0 0.0
    %2011 = vmatpush1.msra.mxu0 %v1972
    %2012 = vmatprep.subr.mxu0 0.0
    %2013 = vmatpush1.msra.mxu0 %v1971
    %2014 = vmatprep.subr.mxu0 0.0
    %2015 = vmatpush1.msra.mxu0 %v1970
    %2016 = vmatprep.subr.mxu0 0.0
    %2017 = vmatpush1.msra.mxu0 %v1969
    %2018 = vmatprep.subr.mxu0 0.0
    %2019 = vmatpush2.msra.mxu0 0.0
    %2020 = vmatprep.subr.mxu0 0.0
    %2021 = vmatpush2.msra.mxu0 0.0
    %2022 = vmatprep.subr.mxu0 0.0
    %2023 = vmatpush2.msra.mxu0 0.0
    %2024 = vmatprep.subr.mxu0 0.0
    %2025 = vmatpush2.msra.mxu0 0.0
    %2026 = vmatprep.subr.mxu0 0.0
    %2027 = vmatpush2.msra.mxu0 0.0
    %2028 = vmatprep.subr.mxu0 0.0
    %2029 = vmatpush2.msra.mxu0 0.0
    %2030 = vmatprep.subr.mxu0 0.0
    %2031 = vmatpush2.msra.mxu0 0.0
    %2032 = vmatprep.subr.mxu0 0.0
    %2033 = vmatpush2.msra.mxu0 0.0
    %2034 = vmatprep.subr.mxu0 0.0
    %2035 = vmatpush2.msra.mxu0 0.0
    %2036 = vmatprep.subr.mxu0 0.0
    %2037 = vmatpush2.msra.mxu0 0.0
    %2038 = vmatprep.subr.mxu0 0.0
    %2039 = vmatpush2.msra.mxu0 0.0
    %2040 = vmatprep.subr.mxu0 0.0
    %2041 = vmatpush2.msra.mxu0 0.0
    %2042 = vmatprep.subr.mxu0 0.0
    %2043 = vmatpush2.msra.mxu0 0.0
    %2044 = vmatprep.subr.mxu0 0.0
    %2045 = vmatpush2.msra.mxu0 0.0
    %2046 = vmatprep.subr.mxu0 0.0
    %2047 = vmatpush2.msra.mxu0 0.0
    %2048 = vmatprep.subr.mxu0 0.0
    %2049 = vmatpush2.msra.mxu0 0.0
    %2050 = vmatprep.mubr.f32.mxu0 0.0
    %2051 = vmatmul.mubr.f32.gmra.mxu0 %v1984
    %v2052 = vpop.f32.mrf.mxu0
    %v2053 = vadd.f32 %v1978, %v2052
    %v2054 = vpop.f32.mrf.mxu0
    %2055 = vdwg.mxu0
    %vm2056 = vcmask 33792
    %2057 = vst.msk [vmem:[#allocation8] sm:$0x3] %vm2056, %v2053
    // Predicated region
    $region46: #{net_forward.1} parent=1 // pred_check
      _
    $region47: #{net_forward.1} parent=1 // pred_check_branch
      %2059 = sbr.rel (0) target = $region49
    $region48: #{net_forward.1} parent=1 // pred_region
      %s2061 = ssub.s32 32, 32
      %2062 = vsyncadd [#allocation5], %s2061
      %s2064 = sshll.u32 [#allocation8], 4
      %s2065 = int_to_ptr.vmem [resolvable:$true] %s2064
      %2067 = dma.vmem_to_hbm [thread:$0]  %s2065, 32, %s9, [#allocation5]
    $region49: #{net_forward.1} parent=1 // pred_fallthru
      _
    // Predicated region
    $region50: #{net_forward.1} parent=1 // pred_check
      _
    $region51: #{net_forward.1} parent=1 // pred_check_branch
      %2069 = sbr.rel (0) target = $region53
    $region52: #{net_forward.1} parent=1 // pred_region
      %2070 = dma.done [#allocation5], 32
    $region53: #{net_forward.1} parent=1 // pred_fallthru
      _
    %2071 = vsyncpa [#allocation4], 1
    %2072 = vsyncpa [#allocation7], 1
    %2073 = vsyncpa [#allocation5], 1

</llo_original>
